<compile_context>
chip_gen: v6e
topology: v6e:2x2x1
jax: 0.10.0
libtpu: 0.0.40
codegen_flags: <defaults>
</compile_context>

<pallas_src>
import functools
import math

import jax
import jax.numpy as jnp
from jax import lax
from jax.experimental import pallas as pl
from jax.experimental.pallas import tpu as pltpu


# ----------------------------------------------------------------------------
# Fused Pallas kernel: qkv projection -> causal attention (batched) -> proj
# ----------------------------------------------------------------------------
def _fused_attn_kernel(x_ref, wa_ref, ba_ref, wp_ref, bp_ref, o_ref,
                       *, b_blk, seq_len, n_head):
    """One batch-block per grid step (all of it with num_batch_blocks=1).

    x_ref : (b_blk*T, C)  input activations, flattened rows (VMEM, f32)
    wa_ref: (C, 3C)       c_attn weight, (in, out) layout (bf16)
    ba_ref: (1, 3C)       c_attn bias (f32)
    wp_ref: (C, C)        c_proj weight (bf16)
    bp_ref: (1, C)        c_proj bias (f32)
    o_ref : (b_blk*T, C)  output activations
    """
    BT, C = x_ref.shape
    T = seq_len
    hd = C // n_head
    scale = 1.0 / math.sqrt(hd)

    # --- QKV projection on the MXU (bf16 operands, f32 accumulate) ----------
    x_bf = x_ref[...].astype(jnp.bfloat16)
    qkv = jnp.dot(x_bf, wa_ref[...], preferred_element_type=jnp.float32)
    qkv = qkv + ba_ref[...]                       # (BT, 3C), f32
    qkv3 = qkv.reshape(b_blk, T, 3 * C)           # leading-dim split only

    # Causal mask, built once per grid step, reused for every head.
    rows = lax.broadcasted_iota(jnp.int32, (b_blk, T, T), 1)
    cols = lax.broadcasted_iota(jnp.int32, (b_blk, T, T), 2)
    causal = cols <= rows
    neg = jnp.float32(jnp.finfo(jnp.float32).min)

    # Output accumulator initialized with the projection bias (hoisted
    # broadcast, kept in registers -- no VMEM scratch slab).
    acc = jnp.broadcast_to(bp_ref[...], (BT, C))

    # --- Per-head attention, batched over the batch dim inside each dot -----
    for h in range(n_head):                       # static unroll
        q_h = qkv3[:, :, h * hd:(h + 1) * hd].astype(jnp.bfloat16)
        k_h = qkv3[:, :, C + h * hd:C + (h + 1) * hd].astype(jnp.bfloat16)
        v_h = qkv3[:, :, 2 * C + h * hd:2 * C + (h + 1) * hd].astype(jnp.bfloat16)

        # q @ k^T with the transpose folded into the batched dot (no .T /
        # explicit XLU transpose); f32 accumulation.
        s = jnp.einsum('btd,bsd->bts', q_h, k_h,
                       preferred_element_type=jnp.float32) * scale
        s = jnp.where(causal, s, neg)

        # Numerically-stable softmax in f32; reciprocal on the EUP slot.
        m = jnp.max(s, axis=-1, keepdims=True)
        p = jnp.exp(s - m)
        p = p * pl.reciprocal(jnp.sum(p, axis=-1, keepdims=True), approx=True)

        # (b, T, T) @ (b, T, hd) -> (b, T, hd), then contract this head's
        # output directly against the matching 8-row (sublane-aligned) slice
        # of W_proj and accumulate: no narrow per-head stores, no f32 slab.
        y_h = jnp.einsum('bts,bsd->btd', p.astype(jnp.bfloat16), v_h,
                         preferred_element_type=jnp.float32)
        acc = acc + jnp.dot(y_h.reshape(BT, hd).astype(jnp.bfloat16),
                            wp_ref[h * hd:(h + 1) * hd, :],
                            preferred_element_type=jnp.float32)

    # Single HBM-facing store.  (Last dim C=32 < 128 -> masked store at the
    # toy shape; irrelevant once C >= 128.)
    o_ref[...] = acc.astype(o_ref.dtype)


# ----------------------------------------------------------------------------
# Wrapper
# ----------------------------------------------------------------------------
def causal_self_attention(x, params, n_head, *, num_batch_blocks=1):
    """Forward pass matching CausalSelfAttention.forward (eval mode).

    num_batch_blocks=1 folds the whole batch into one grid step (best for the
    single-TensorCore v5e/v6e at small shapes); on v7x with B >= 2 per chip,
    num_batch_blocks=2 shards the batch across both TensorCores.
    """
    B, T, C = x.shape
    assert B % num_batch_blocks == 0
    b_blk = B // num_batch_blocks

    # Pre-cast weights to bf16 in the wrapper: halves weight DMA bytes and
    # VMEM residency, removes per-step in-kernel casts.  Biases stay f32.
    wa = params["w_attn"].astype(jnp.bfloat16)               # (C, 3C)
    ba = params["b_attn"].reshape(1, 3 * C).astype(jnp.float32)
    wp = params["w_proj"].astype(jnp.bfloat16)                # (C, C)
    bp = params["b_proj"].reshape(1, C).astype(jnp.float32)

    x2 = x.reshape(B * T, C)                                  # free, host-side

    kernel = functools.partial(_fused_attn_kernel,
                               b_blk=b_blk, seq_len=T, n_head=n_head)

    row_spec = pl.BlockSpec((b_blk * T, C), lambda i: (i, 0))
    out2 = pl.pallas_call(
        kernel,
        out_shape=jax.ShapeDtypeStruct((B * T, C), x.dtype),
        grid=(num_batch_blocks,),
        in_specs=[
            row_spec,                                         # x (rows)
            pl.BlockSpec((C, 3 * C), lambda i: (0, 0)),       # w_attn (bf16)
            pl.BlockSpec((1, 3 * C), lambda i: (0, 0)),       # b_attn (f32)
            pl.BlockSpec((C, C), lambda i: (0, 0)),           # w_proj (bf16)
            pl.BlockSpec((1, C), lambda i: (0, 0)),           # b_proj (f32)
        ],
        out_specs=row_spec,
        compiler_params=pltpu.CompilerParams(
            dimension_semantics=("parallel",)),
    )(x2, wa, ba, wp, bp)
    return out2.reshape(B, T, C)


# ----------------------------------------------------------------------------
# Reference (plain JAX, f32) for sanity checking
# ----------------------------------------------------------------------------
def reference(x, params, n_head):
    B, T, C = x.shape
    hd = C // n_head
    qkv = x.reshape(B * T, C) @ params["w_attn"] + params["b_attn"]
    qkv = qkv.reshape(B, T, 3 * C)
    q, k, v = jnp.split(qkv, 3, axis=2)
    q = q.reshape(B, T, n_head, hd).transpose(0, 2, 1, 3)
    k = k.reshape(B, T, n_head, hd).transpose(0, 2, 1, 3)
    v = v.reshape(B, T, n_head, hd).transpose(0, 2, 1, 3)
    att = (q @ jnp.swapaxes(k, -2, -1)) / math.sqrt(hd)
    mask = jnp.tril(jnp.ones((T, T), dtype=bool))
    att = jnp.where(mask[None, None], att, -jnp.inf)
    att = jax.nn.softmax(att, axis=-1)
    y = att @ v
    y = y.transpose(0, 2, 1, 3).reshape(B, T, C)
    y = y.reshape(B * T, C) @ params["w_proj"] + params["b_proj"]
    return y.reshape(B, T, C)


# ----------------------------------------------------------------------------
# Main
# ----------------------------------------------------------------------------
if __name__ == "__main__":
    # Config: n_embed=32, n_head=4, block_size=8, bias=True, dropout=0.0
    B, T, C, n_head = 2, 8, 32, 4

    key = jax.random.PRNGKey(0)
    kx, kw1, kb1, kw2, kb2 = jax.random.split(key, 5)

    x = jax.random.normal(kx, (B, T, C), dtype=jnp.float32)

    # PyTorch Linear weight is (out, in); we store the transposed (in, out)
    # layout so the kernel computes x @ W.
    params = {
        "w_attn": jax.random.normal(kw1, (C, 3 * C), dtype=jnp.float32) * 0.02,
        "b_attn": jax.random.normal(kb1, (3 * C,), dtype=jnp.float32) * 0.02,
        "w_proj": jax.random.normal(kw2, (C, C), dtype=jnp.float32) * 0.02,
        "b_proj": jax.random.normal(kb2, (C,), dtype=jnp.float32) * 0.02,
    }

    out = causal_self_attention(x, params, n_head)
    out = jax.block_until_ready(out)

    ref = reference(x, params, n_head)
    assert out.shape == (B, T, C)
    # Tolerance accounts for bf16 MXU operands + approx EUP reciprocal vs the
    # pure-f32 reference; structural/layout bugs would be O(1e-2) or larger.
    assert jnp.allclose(out, ref, atol=2e-3, rtol=2e-2), "mismatch vs reference"

    print("KERNEL_OK")
</pallas_src>

<mosaic_0001>
module attributes {stable_mosaic.version = 11 : i64} {
  func.func @_fused_attn_kernel(%arg0: i32, %arg1: memref<16x32xf32, #tpu.memory_space<vmem>>, %arg2: memref<32x96xbf16, #tpu.memory_space<vmem>>, %arg3: memref<1x96xf32, #tpu.memory_space<vmem>>, %arg4: memref<32x32xbf16, #tpu.memory_space<vmem>>, %arg5: memref<1x32xf32, #tpu.memory_space<vmem>>, %arg6: memref<16x32xf32, #tpu.memory_space<vmem>>) attributes {dimension_semantics = [#tpu.dimension_semantics<parallel>], iteration_bounds = array<i64: 1>, scalar_prefetch = 0 : i64, scratch_operands = 0 : i64, tpu.core_type = #tpu.core_type<tc>, window_params = [{transform_indices = @transform_0, window_bounds = array<i64: 16, 32>}, {pipeline_mode = #tpu.pipeline_mode<synchronous>, transform_indices = @transform_1, window_bounds = array<i64: 32, 96>}, {pipeline_mode = #tpu.pipeline_mode<synchronous>, transform_indices = @transform_2, window_bounds = array<i64: 1, 96>}, {pipeline_mode = #tpu.pipeline_mode<synchronous>, transform_indices = @transform_3, window_bounds = array<i64: 32, 32>}, {pipeline_mode = #tpu.pipeline_mode<synchronous>, transform_indices = @transform_4, window_bounds = array<i64: 1, 32>}, {transform_indices = @transform_5, window_bounds = array<i64: 16, 32>}]} {
    %c0 = arith.constant 0 : index
    %c0_0 = arith.constant 0 : index
    %0 = vector.load %arg1[%c0, %c0_0] : memref<16x32xf32, #tpu.memory_space<vmem>>, vector<16x32xf32>
    %1 = arith.truncf %0 : vector<16x32xf32> to vector<16x32xbf16>
    %c0_1 = arith.constant 0 : index
    %c0_2 = arith.constant 0 : index
    %2 = vector.load %arg2[%c0_1, %c0_2] : memref<32x96xbf16, #tpu.memory_space<vmem>>, vector<32x96xbf16>
    %cst = arith.constant dense<0.000000e+00> : vector<16x96xf32>
    %3 = tpu.matmul %1, %2, %cst {dimension_numbers = #tpu.dot_dimension_numbers<[1], [0], [0], [1], [0, 0, 1, 1], [], []>} : vector<16x32xbf16>, vector<32x96xbf16>, vector<16x96xf32> -> vector<16x96xf32>
    %c0_3 = arith.constant 0 : index
    %c0_4 = arith.constant 0 : index
    %4 = vector.load %arg3[%c0_3, %c0_4] : memref<1x96xf32, #tpu.memory_space<vmem>>, vector<1x96xf32>
    %5 = vector.broadcast %4 : vector<1x96xf32> to vector<16x96xf32>
    %6 = arith.addf %3, %5 : vector<16x96xf32>
    %7 = vector.shape_cast %6 : vector<16x96xf32> to vector<2x8x96xf32>
    %8 = tpu.iota {dimensions = array<i32: 1>} : vector<2x8x8xi32>
    %9 = tpu.iota {dimensions = array<i32: 2>} : vector<2x8x8xi32>
    %10 = arith.cmpi sle, %9, %8 : vector<2x8x8xi32>
    %c0_5 = arith.constant 0 : index
    %c0_6 = arith.constant 0 : index
    %11 = vector.load %arg5[%c0_5, %c0_6] : memref<1x32xf32, #tpu.memory_space<vmem>>, vector<1x32xf32>
    %12 = vector.shape_cast %11 : vector<1x32xf32> to vector<1x32xf32>
    %13 = vector.broadcast %12 : vector<1x32xf32> to vector<16x32xf32>
    %14 = vector.extract_strided_slice %7 {offsets = [0, 0, 0], sizes = [2, 8, 8], strides = [1, 1, 1]} : vector<2x8x96xf32> to vector<2x8x8xf32>
    %15 = arith.truncf %14 : vector<2x8x8xf32> to vector<2x8x8xbf16>
    %16 = vector.extract_strided_slice %7 {offsets = [0, 0, 32], sizes = [2, 8, 8], strides = [1, 1, 1]} : vector<2x8x96xf32> to vector<2x8x8xf32>
    %17 = arith.truncf %16 : vector<2x8x8xf32> to vector<2x8x8xbf16>
    %18 = vector.extract_strided_slice %7 {offsets = [0, 0, 64], sizes = [2, 8, 8], strides = [1, 1, 1]} : vector<2x8x96xf32> to vector<2x8x8xf32>
    %19 = arith.truncf %18 : vector<2x8x8xf32> to vector<2x8x8xbf16>
    "tpu.trace_start"() <{level = 10 : i32, message = "btd,bsd->bts"}> : () -> ()
    %cst_7 = arith.constant dense<0.000000e+00> : vector<2x8x8xf32>
    %20 = tpu.matmul %15, %17, %cst_7 {dimension_numbers = #tpu.dot_dimension_numbers<[2], [2], [1], [1], [0, 0, 0, 1, 1, 1], [0], [0]>} : vector<2x8x8xbf16>, vector<2x8x8xbf16>, vector<2x8x8xf32> -> vector<2x8x8xf32>
    "tpu.trace_stop"() : () -> ()
    %cst_8 = arith.constant 0.353553385 : f32
    %21 = vector.broadcast %cst_8 : f32 to vector<2x8x8xf32>
    %22 = arith.mulf %20, %21 : vector<2x8x8xf32>
    %cst_9 = arith.constant -3.40282347E+38 : f32
    %23 = vector.broadcast %cst_9 : f32 to vector<2x8x8xf32>
    %24 = arith.select %10, %22, %23 : vector<2x8x8xi1>, vector<2x8x8xf32>
    %cst_10 = arith.constant dense<0xFF800000> : vector<2x8xf32>
    %25 = vector.multi_reduction <maximumf>, %24, %cst_10 [2] : vector<2x8x8xf32> to vector<2x8xf32>
    %26 = vector.shape_cast %25 : vector<2x8xf32> to vector<2x8x1xf32>
    %27 = vector.broadcast %26 : vector<2x8x1xf32> to vector<2x8x8xf32>
    %28 = arith.subf %24, %27 : vector<2x8x8xf32>
    %29 = math.exp %28 : vector<2x8x8xf32>
    %cst_11 = arith.constant dense<0.000000e+00> : vector<2x8xf32>
    %30 = vector.multi_reduction <add>, %29, %cst_11 [2] : vector<2x8x8xf32> to vector<2x8xf32>
    %31 = vector.shape_cast %30 : vector<2x8xf32> to vector<2x8x1xf32>
    %32 = tpu.reciprocal %31 {approx = true} : vector<2x8x1xf32> -> vector<2x8x1xf32>
    %33 = vector.broadcast %32 : vector<2x8x1xf32> to vector<2x8x8xf32>
    %34 = arith.mulf %29, %33 : vector<2x8x8xf32>
    %35 = arith.truncf %34 : vector<2x8x8xf32> to vector<2x8x8xbf16>
    "tpu.trace_start"() <{level = 10 : i32, message = "bts,bsd->btd"}> : () -> ()
    %cst_12 = arith.constant dense<0.000000e+00> : vector<2x8x8xf32>
    %36 = tpu.matmul %35, %19, %cst_12 {dimension_numbers = #tpu.dot_dimension_numbers<[2], [1], [1], [2], [0, 0, 0, 1, 1, 2], [0], [0]>} : vector<2x8x8xbf16>, vector<2x8x8xbf16>, vector<2x8x8xf32> -> vector<2x8x8xf32>
    "tpu.trace_stop"() : () -> ()
    %37 = vector.shape_cast %36 : vector<2x8x8xf32> to vector<16x8xf32>
    %38 = arith.truncf %37 : vector<16x8xf32> to vector<16x8xbf16>
    %c0_13 = arith.constant 0 : index
    %c0_14 = arith.constant 0 : index
    %39 = vector.load %arg4[%c0_13, %c0_14] : memref<32x32xbf16, #tpu.memory_space<vmem>>, vector<8x32xbf16>
    %cst_15 = arith.constant dense<0.000000e+00> : vector<16x32xf32>
    %40 = tpu.matmul %38, %39, %cst_15 {dimension_numbers = #tpu.dot_dimension_numbers<[1], [0], [0], [1], [0, 0, 1, 1], [], []>} : vector<16x8xbf16>, vector<8x32xbf16>, vector<16x32xf32> -> vector<16x32xf32>
    %41 = arith.addf %13, %40 : vector<16x32xf32>
    %42 = vector.extract_strided_slice %7 {offsets = [0, 0, 8], sizes = [2, 8, 8], strides = [1, 1, 1]} : vector<2x8x96xf32> to vector<2x8x8xf32>
    %43 = arith.truncf %42 : vector<2x8x8xf32> to vector<2x8x8xbf16>
    %44 = vector.extract_strided_slice %7 {offsets = [0, 0, 40], sizes = [2, 8, 8], strides = [1, 1, 1]} : vector<2x8x96xf32> to vector<2x8x8xf32>
    %45 = arith.truncf %44 : vector<2x8x8xf32> to vector<2x8x8xbf16>
    %46 = vector.extract_strided_slice %7 {offsets = [0, 0, 72], sizes = [2, 8, 8], strides = [1, 1, 1]} : vector<2x8x96xf32> to vector<2x8x8xf32>
    %47 = arith.truncf %46 : vector<2x8x8xf32> to vector<2x8x8xbf16>
    "tpu.trace_start"() <{level = 10 : i32, message = "btd,bsd->bts"}> : () -> ()
    %cst_16 = arith.constant dense<0.000000e+00> : vector<2x8x8xf32>
    %48 = tpu.matmul %43, %45, %cst_16 {dimension_numbers = #tpu.dot_dimension_numbers<[2], [2], [1], [1], [0, 0, 0, 1, 1, 1], [0], [0]>} : vector<2x8x8xbf16>, vector<2x8x8xbf16>, vector<2x8x8xf32> -> vector<2x8x8xf32>
    "tpu.trace_stop"() : () -> ()
    %cst_17 = arith.constant 0.353553385 : f32
    %49 = vector.broadcast %cst_17 : f32 to vector<2x8x8xf32>
    %50 = arith.mulf %48, %49 : vector<2x8x8xf32>
    %cst_18 = arith.constant -3.40282347E+38 : f32
    %51 = vector.broadcast %cst_18 : f32 to vector<2x8x8xf32>
    %52 = arith.select %10, %50, %51 : vector<2x8x8xi1>, vector<2x8x8xf32>
    %cst_19 = arith.constant dense<0xFF800000> : vector<2x8xf32>
    %53 = vector.multi_reduction <maximumf>, %52, %cst_19 [2] : vector<2x8x8xf32> to vector<2x8xf32>
    %54 = vector.shape_cast %53 : vector<2x8xf32> to vector<2x8x1xf32>
    %55 = vector.broadcast %54 : vector<2x8x1xf32> to vector<2x8x8xf32>
    %56 = arith.subf %52, %55 : vector<2x8x8xf32>
    %57 = math.exp %56 : vector<2x8x8xf32>
    %cst_20 = arith.constant dense<0.000000e+00> : vector<2x8xf32>
    %58 = vector.multi_reduction <add>, %57, %cst_20 [2] : vector<2x8x8xf32> to vector<2x8xf32>
    %59 = vector.shape_cast %58 : vector<2x8xf32> to vector<2x8x1xf32>
    %60 = tpu.reciprocal %59 {approx = true} : vector<2x8x1xf32> -> vector<2x8x1xf32>
    %61 = vector.broadcast %60 : vector<2x8x1xf32> to vector<2x8x8xf32>
    %62 = arith.mulf %57, %61 : vector<2x8x8xf32>
    %63 = arith.truncf %62 : vector<2x8x8xf32> to vector<2x8x8xbf16>
    "tpu.trace_start"() <{level = 10 : i32, message = "bts,bsd->btd"}> : () -> ()
    %cst_21 = arith.constant dense<0.000000e+00> : vector<2x8x8xf32>
    %64 = tpu.matmul %63, %47, %cst_21 {dimension_numbers = #tpu.dot_dimension_numbers<[2], [1], [1], [2], [0, 0, 0, 1, 1, 2], [0], [0]>} : vector<2x8x8xbf16>, vector<2x8x8xbf16>, vector<2x8x8xf32> -> vector<2x8x8xf32>
    "tpu.trace_stop"() : () -> ()
    %65 = vector.shape_cast %64 : vector<2x8x8xf32> to vector<16x8xf32>
    %66 = arith.truncf %65 : vector<16x8xf32> to vector<16x8xbf16>
    %c8 = arith.constant 8 : index
    %c0_22 = arith.constant 0 : index
    %67 = vector.load %arg4[%c8, %c0_22] : memref<32x32xbf16, #tpu.memory_space<vmem>>, vector<8x32xbf16>
    %cst_23 = arith.constant dense<0.000000e+00> : vector<16x32xf32>
    %68 = tpu.matmul %66, %67, %cst_23 {dimension_numbers = #tpu.dot_dimension_numbers<[1], [0], [0], [1], [0, 0, 1, 1], [], []>} : vector<16x8xbf16>, vector<8x32xbf16>, vector<16x32xf32> -> vector<16x32xf32>
    %69 = arith.addf %41, %68 : vector<16x32xf32>
    %70 = vector.extract_strided_slice %7 {offsets = [0, 0, 16], sizes = [2, 8, 8], strides = [1, 1, 1]} : vector<2x8x96xf32> to vector<2x8x8xf32>
    %71 = arith.truncf %70 : vector<2x8x8xf32> to vector<2x8x8xbf16>
    %72 = vector.extract_strided_slice %7 {offsets = [0, 0, 48], sizes = [2, 8, 8], strides = [1, 1, 1]} : vector<2x8x96xf32> to vector<2x8x8xf32>
    %73 = arith.truncf %72 : vector<2x8x8xf32> to vector<2x8x8xbf16>
    %74 = vector.extract_strided_slice %7 {offsets = [0, 0, 80], sizes = [2, 8, 8], strides = [1, 1, 1]} : vector<2x8x96xf32> to vector<2x8x8xf32>
    %75 = arith.truncf %74 : vector<2x8x8xf32> to vector<2x8x8xbf16>
    "tpu.trace_start"() <{level = 10 : i32, message = "btd,bsd->bts"}> : () -> ()
    %cst_24 = arith.constant dense<0.000000e+00> : vector<2x8x8xf32>
    %76 = tpu.matmul %71, %73, %cst_24 {dimension_numbers = #tpu.dot_dimension_numbers<[2], [2], [1], [1], [0, 0, 0, 1, 1, 1], [0], [0]>} : vector<2x8x8xbf16>, vector<2x8x8xbf16>, vector<2x8x8xf32> -> vector<2x8x8xf32>
    "tpu.trace_stop"() : () -> ()
    %cst_25 = arith.constant 0.353553385 : f32
    %77 = vector.broadcast %cst_25 : f32 to vector<2x8x8xf32>
    %78 = arith.mulf %76, %77 : vector<2x8x8xf32>
    %cst_26 = arith.constant -3.40282347E+38 : f32
    %79 = vector.broadcast %cst_26 : f32 to vector<2x8x8xf32>
    %80 = arith.select %10, %78, %79 : vector<2x8x8xi1>, vector<2x8x8xf32>
    %cst_27 = arith.constant dense<0xFF800000> : vector<2x8xf32>
    %81 = vector.multi_reduction <maximumf>, %80, %cst_27 [2] : vector<2x8x8xf32> to vector<2x8xf32>
    %82 = vector.shape_cast %81 : vector<2x8xf32> to vector<2x8x1xf32>
    %83 = vector.broadcast %82 : vector<2x8x1xf32> to vector<2x8x8xf32>
    %84 = arith.subf %80, %83 : vector<2x8x8xf32>
    %85 = math.exp %84 : vector<2x8x8xf32>
    %cst_28 = arith.constant dense<0.000000e+00> : vector<2x8xf32>
    %86 = vector.multi_reduction <add>, %85, %cst_28 [2] : vector<2x8x8xf32> to vector<2x8xf32>
    %87 = vector.shape_cast %86 : vector<2x8xf32> to vector<2x8x1xf32>
    %88 = tpu.reciprocal %87 {approx = true} : vector<2x8x1xf32> -> vector<2x8x1xf32>
    %89 = vector.broadcast %88 : vector<2x8x1xf32> to vector<2x8x8xf32>
    %90 = arith.mulf %85, %89 : vector<2x8x8xf32>
    %91 = arith.truncf %90 : vector<2x8x8xf32> to vector<2x8x8xbf16>
    "tpu.trace_start"() <{level = 10 : i32, message = "bts,bsd->btd"}> : () -> ()
    %cst_29 = arith.constant dense<0.000000e+00> : vector<2x8x8xf32>
    %92 = tpu.matmul %91, %75, %cst_29 {dimension_numbers = #tpu.dot_dimension_numbers<[2], [1], [1], [2], [0, 0, 0, 1, 1, 2], [0], [0]>} : vector<2x8x8xbf16>, vector<2x8x8xbf16>, vector<2x8x8xf32> -> vector<2x8x8xf32>
    "tpu.trace_stop"() : () -> ()
    %93 = vector.shape_cast %92 : vector<2x8x8xf32> to vector<16x8xf32>
    %94 = arith.truncf %93 : vector<16x8xf32> to vector<16x8xbf16>
    %c16 = arith.constant 16 : index
    %c0_30 = arith.constant 0 : index
    %95 = vector.load %arg4[%c16, %c0_30] : memref<32x32xbf16, #tpu.memory_space<vmem>>, vector<8x32xbf16>
    %cst_31 = arith.constant dense<0.000000e+00> : vector<16x32xf32>
    %96 = tpu.matmul %94, %95, %cst_31 {dimension_numbers = #tpu.dot_dimension_numbers<[1], [0], [0], [1], [0, 0, 1, 1], [], []>} : vector<16x8xbf16>, vector<8x32xbf16>, vector<16x32xf32> -> vector<16x32xf32>
    %97 = arith.addf %69, %96 : vector<16x32xf32>
    %98 = vector.extract_strided_slice %7 {offsets = [0, 0, 24], sizes = [2, 8, 8], strides = [1, 1, 1]} : vector<2x8x96xf32> to vector<2x8x8xf32>
    %99 = arith.truncf %98 : vector<2x8x8xf32> to vector<2x8x8xbf16>
    %100 = vector.extract_strided_slice %7 {offsets = [0, 0, 56], sizes = [2, 8, 8], strides = [1, 1, 1]} : vector<2x8x96xf32> to vector<2x8x8xf32>
    %101 = arith.truncf %100 : vector<2x8x8xf32> to vector<2x8x8xbf16>
    %102 = vector.extract_strided_slice %7 {offsets = [0, 0, 88], sizes = [2, 8, 8], strides = [1, 1, 1]} : vector<2x8x96xf32> to vector<2x8x8xf32>
    %103 = arith.truncf %102 : vector<2x8x8xf32> to vector<2x8x8xbf16>
    "tpu.trace_start"() <{level = 10 : i32, message = "btd,bsd->bts"}> : () -> ()
    %cst_32 = arith.constant dense<0.000000e+00> : vector<2x8x8xf32>
    %104 = tpu.matmul %99, %101, %cst_32 {dimension_numbers = #tpu.dot_dimension_numbers<[2], [2], [1], [1], [0, 0, 0, 1, 1, 1], [0], [0]>} : vector<2x8x8xbf16>, vector<2x8x8xbf16>, vector<2x8x8xf32> -> vector<2x8x8xf32>
    "tpu.trace_stop"() : () -> ()
    %cst_33 = arith.constant 0.353553385 : f32
    %105 = vector.broadcast %cst_33 : f32 to vector<2x8x8xf32>
    %106 = arith.mulf %104, %105 : vector<2x8x8xf32>
    %cst_34 = arith.constant -3.40282347E+38 : f32
    %107 = vector.broadcast %cst_34 : f32 to vector<2x8x8xf32>
    %108 = arith.select %10, %106, %107 : vector<2x8x8xi1>, vector<2x8x8xf32>
    %cst_35 = arith.constant dense<0xFF800000> : vector<2x8xf32>
    %109 = vector.multi_reduction <maximumf>, %108, %cst_35 [2] : vector<2x8x8xf32> to vector<2x8xf32>
    %110 = vector.shape_cast %109 : vector<2x8xf32> to vector<2x8x1xf32>
    %111 = vector.broadcast %110 : vector<2x8x1xf32> to vector<2x8x8xf32>
    %112 = arith.subf %108, %111 : vector<2x8x8xf32>
    %113 = math.exp %112 : vector<2x8x8xf32>
    %cst_36 = arith.constant dense<0.000000e+00> : vector<2x8xf32>
    %114 = vector.multi_reduction <add>, %113, %cst_36 [2] : vector<2x8x8xf32> to vector<2x8xf32>
    %115 = vector.shape_cast %114 : vector<2x8xf32> to vector<2x8x1xf32>
    %116 = tpu.reciprocal %115 {approx = true} : vector<2x8x1xf32> -> vector<2x8x1xf32>
    %117 = vector.broadcast %116 : vector<2x8x1xf32> to vector<2x8x8xf32>
    %118 = arith.mulf %113, %117 : vector<2x8x8xf32>
    %119 = arith.truncf %118 : vector<2x8x8xf32> to vector<2x8x8xbf16>
    "tpu.trace_start"() <{level = 10 : i32, message = "bts,bsd->btd"}> : () -> ()
    %cst_37 = arith.constant dense<0.000000e+00> : vector<2x8x8xf32>
    %120 = tpu.matmul %119, %103, %cst_37 {dimension_numbers = #tpu.dot_dimension_numbers<[2], [1], [1], [2], [0, 0, 0, 1, 1, 2], [0], [0]>} : vector<2x8x8xbf16>, vector<2x8x8xbf16>, vector<2x8x8xf32> -> vector<2x8x8xf32>
    "tpu.trace_stop"() : () -> ()
    %121 = vector.shape_cast %120 : vector<2x8x8xf32> to vector<16x8xf32>
    %122 = arith.truncf %121 : vector<16x8xf32> to vector<16x8xbf16>
    %c24 = arith.constant 24 : index
    %c0_38 = arith.constant 0 : index
    %123 = vector.load %arg4[%c24, %c0_38] : memref<32x32xbf16, #tpu.memory_space<vmem>>, vector<8x32xbf16>
    %cst_39 = arith.constant dense<0.000000e+00> : vector<16x32xf32>
    %124 = tpu.matmul %122, %123, %cst_39 {dimension_numbers = #tpu.dot_dimension_numbers<[1], [0], [0], [1], [0, 0, 1, 1], [], []>} : vector<16x8xbf16>, vector<8x32xbf16>, vector<16x32xf32> -> vector<16x32xf32>
    %125 = arith.addf %97, %124 : vector<16x32xf32>
    %c0_40 = arith.constant 0 : index
    %c0_41 = arith.constant 0 : index
    %126 = vector.load %arg6[%c0_40, %c0_41] : memref<16x32xf32, #tpu.memory_space<vmem>>, vector<16x32xf32>
    tpu.vector_store %arg6[%c0_40, %c0_41], %125 {strides = array<i32>} : memref<16x32xf32, #tpu.memory_space<vmem>>, vector<16x32xf32>,
    return
  }
  func.func @transform_0(%arg0: i32) -> (i32, i32) {
    %c0_i32 = arith.constant 0 : i32
    %c0_i32_0 = arith.constant 0 : i32
    return %arg0, %c0_i32 : i32, i32
  }
  func.func @transform_1(%arg0: i32) -> (i32, i32) {
    %c0_i32 = arith.constant 0 : i32
    %c0_i32_0 = arith.constant 0 : i32
    %c0_i32_1 = arith.constant 0 : i32
    return %c0_i32, %c0_i32_0 : i32, i32
  }
  func.func @transform_2(%arg0: i32) -> (i32, i32) {
    %c0_i32 = arith.constant 0 : i32
    %c0_i32_0 = arith.constant 0 : i32
    %c0_i32_1 = arith.constant 0 : i32
    return %c0_i32, %c0_i32_0 : i32, i32
  }
  func.func @transform_3(%arg0: i32) -> (i32, i32) {
    %c0_i32 = arith.constant 0 : i32
    %c0_i32_0 = arith.constant 0 : i32
    %c0_i32_1 = arith.constant 0 : i32
    return %c0_i32, %c0_i32_0 : i32, i32
  }
  func.func @transform_4(%arg0: i32) -> (i32, i32) {
    %c0_i32 = arith.constant 0 : i32
    %c0_i32_0 = arith.constant 0 : i32
    %c0_i32_1 = arith.constant 0 : i32
    return %c0_i32, %c0_i32_0 : i32, i32
  }
  func.func @transform_5(%arg0: i32) -> (i32, i32) {
    %c0_i32 = arith.constant 0 : i32
    %c0_i32_0 = arith.constant 0 : i32
    return %arg0, %c0_i32 : i32, i32
  }
}

</mosaic_0001>

<llo_original>
// kernel: tpu_custom_call.1
$region0: #{tpu_custom_call.1}
  #allocation0 [shape = 'u32[]', space=smem, size = 0x4, offset = 0x4, fixed_abs, tag = 'smem constant byte address 0x4 - core index']
  #allocation1 [shape = 'u32[144,128]{1,0:T(1,128)}', space=vmem, size = 0x12000, scoped, tag = 'internal scratch']
  %s0 = inlined_call_operand.hbm [shape: f32[16,32], index: 0, kind: input, shape index: {}]
  %s1 = inlined_call_operand.hbm [shape: bf16[32,96], index: 1, kind: input, shape index: {}]
  %s2 = inlined_call_operand.vmem [shape: f32[1,96], index: 2, kind: input, shape index: {}]
  %s3 = inlined_call_operand.hbm [shape: bf16[32,32], index: 3, kind: input, shape index: {}]
  %s4 = inlined_call_operand.vmem [shape: f32[1,32], index: 4, kind: input, shape index: {}]
  %s5 = inlined_call_operand.hbm [shape: f32[16,32], index: 5, kind: output, shape index: {}]
  %s6 = sld [smem:[#allocation0]]
  $region42: #{tpu_custom_call.1} parent=0
    _
  %s8 = ssub.s32 1, %s6
  %s9 = scalar_select 0, %s8, %s6
  $region1: #{tpu_custom_call.1} parent=0
    #allocation2 [shape = 'u8[8192]{0}', space=vmem, size = 0x2000, scoped, tag = 'input window, operand 0, single buffered']
    #allocation3 [shape = 's32[1]{0}', space=sflag, size = 0x4, scoped, tag = 'scoped memory for tpu_custom_call.1']
    #allocation4 [shape = 's32[1]{0}', space=sflag, size = 0x4, scoped, tag = 'scoped memory for tpu_custom_call.1']
    #allocation5 [shape = 'u8[8192]{0}', space=vmem, size = 0x2000, scoped, tag = 'input window, operand 1, single buffered']
    #allocation6 [shape = 's32[1]{0}', space=sflag, size = 0x4, scoped, tag = 'scoped memory for tpu_custom_call.1']
    #allocation7 [shape = 'u8[8192]{0}', space=vmem, size = 0x2000, scoped, tag = 'input window, operand 3, single buffered']
    #allocation8 [shape = 'u8[8192]{0}', space=vmem, size = 0x2000, scoped, tag = 'output window, operand 0, single buffered']
    %10 = vsyncpa [#allocation3], 0
    %11 = vsyncpa [#allocation6], 0
    %12 = vsyncpa [#allocation4], 0
    // Predicated region
    $region2: #{tpu_custom_call.1} parent=1 // pred_check
      _
    $region3: #{tpu_custom_call.1} parent=1 // pred_check_branch
      %14 = sbr.rel (0) target = $region5
    $region4: #{tpu_custom_call.1} parent=1 // pred_region
      %s16 = ssub.s32 256, 256
      %17 = vsyncadd [#allocation3], %s16
      %s18 = sshll.u32 [#allocation2], 4
      %s19 = int_to_ptr.vmem [resolvable:$true] %s18
      %24 = dma.hbm_to_vmem [thread:$0]  %s0, 256, %s19, [#allocation3], 128, 128, 8
    $region5: #{tpu_custom_call.1} parent=1 // pred_fallthru
      _
    // Predicated region
    $region6: #{tpu_custom_call.1} parent=1 // pred_check
      _
    $region7: #{tpu_custom_call.1} parent=1 // pred_check_branch
      %26 = sbr.rel (0) target = $region9
    $region8: #{tpu_custom_call.1} parent=1 // pred_region
      %s28 = ssub.s32 256, 256
      %29 = vsyncadd [#allocation6], %s28
      %s30 = sshll.u32 [#allocation5], 4
      %s31 = int_to_ptr.vmem [resolvable:$true] %s30
      %36 = dma.hbm_to_vmem [thread:$0]  %s1, 256, %s31, [#allocation6], 64, 64, 4
    $region9: #{tpu_custom_call.1} parent=1 // pred_fallthru
      _
    // Predicated region
    $region10: #{tpu_custom_call.1} parent=1 // pred_check
      _
    $region11: #{tpu_custom_call.1} parent=1 // pred_check_branch
      %38 = sbr.rel (0) target = $region13
    $region12: #{tpu_custom_call.1} parent=1 // pred_region
      _
    $region13: #{tpu_custom_call.1} parent=1 // pred_fallthru
      _
    // Predicated region
    $region14: #{tpu_custom_call.1} parent=1 // pred_check
      _
    $region15: #{tpu_custom_call.1} parent=1 // pred_check_branch
      %40 = sbr.rel (0) target = $region17
    $region16: #{tpu_custom_call.1} parent=1 // pred_region
      %s42 = ssub.s32 256, 256
      %43 = vsyncadd [#allocation6], %s42
      %s44 = sshll.u32 [#allocation7], 4
      %s45 = int_to_ptr.vmem [resolvable:$true] %s44
      %50 = dma.hbm_to_vmem [thread:$0]  %s3, 256, %s45, [#allocation6], 64, 64, 4
    $region17: #{tpu_custom_call.1} parent=1 // pred_fallthru
      _
    // Predicated region
    $region18: #{tpu_custom_call.1} parent=1 // pred_check
      _
    $region19: #{tpu_custom_call.1} parent=1 // pred_check_branch
      %52 = sbr.rel (0) target = $region21
    $region20: #{tpu_custom_call.1} parent=1 // pred_region
      _
    $region21: #{tpu_custom_call.1} parent=1 // pred_fallthru
      _
    // Predicated region
    $region22: #{tpu_custom_call.1} parent=1 // pred_check
      _
    $region23: #{tpu_custom_call.1} parent=1 // pred_check_branch
      %54 = sbr.rel (0) target = $region25
    $region24: #{tpu_custom_call.1} parent=1 // pred_region
      %55 = dma.done [#allocation3], 256
    $region25: #{tpu_custom_call.1} parent=1 // pred_fallthru
      _
    // Predicated region
    $region26: #{tpu_custom_call.1} parent=1 // pred_check
      _
    $region27: #{tpu_custom_call.1} parent=1 // pred_check_branch
      %57 = sbr.rel (0) target = $region29
    $region28: #{tpu_custom_call.1} parent=1 // pred_region
      %58 = dma.done [#allocation6], 256
    $region29: #{tpu_custom_call.1} parent=1 // pred_fallthru
      _
    // Predicated region
    $region30: #{tpu_custom_call.1} parent=1 // pred_check
      _
    $region31: #{tpu_custom_call.1} parent=1 // pred_check_branch
      %60 = sbr.rel (0) target = $region33
    $region32: #{tpu_custom_call.1} parent=1 // pred_region
      %61 = dma.done [#allocation6], 256
    $region33: #{tpu_custom_call.1} parent=1 // pred_fallthru
      _
    %v63 = vld [vmem:[#allocation2] sm:$0xff]
    %v64 = vld [vmem:[#allocation2 + $0x8] sm:$0xff]
    %v65 = vpack.c.bf16 %v64, %v63
    %v66 = vld [vmem:[#allocation5] sm:$0xf]
    %v67 = vld [vmem:[#allocation5 + $0x4] sm:$0xf]
    %v68 = vld [vmem:[#allocation5 + $0x8] sm:$0xf]
    %v69 = vld [vmem:[#allocation5 + $0xc] sm:$0xf]
    %v70 = vld [vmem:[%s2] sm:$0x1]
    %v72 = vlaneseq
    %v73 = vshrl.u32 %v72, 7
    %v74 = vsub.s32 0, %v73
    %v75 = vrot.slane %v70, %v74
    %v81 = vunpack.c.l.b16 %v66
    %v82 = vunpack.c.l.b16 %v67
    %v83 = vunpack.c.l.b16 %v68
    %v84 = vunpack.c.l.b16 %v69
    %v85 = vpack.c.b16 %v82, %v81
    %v86 = vpack.c.b16 %v84, %v83
    %vm89 = vcmask 261120
    %v91 = vsel %vm89, %v65, 0
    %93 = vmatprep.subr.bf16.mxu0 0
    %94 = vmatpush1.bf16.msra.mxu0 0
    %95 = vmatprep.subr.bf16.mxu0 0
    %96 = vmatpush1.bf16.msra.mxu0 0
    %97 = vmatprep.subr.bf16.mxu0 0
    %98 = vmatpush1.bf16.msra.mxu0 0
    %99 = vmatprep.subr.bf16.mxu0 0
    %100 = vmatpush1.bf16.msra.mxu0 0
    %101 = vmatprep.subr.bf16.mxu0 0
    %102 = vmatpush1.bf16.msra.mxu0 0
    %103 = vmatprep.subr.bf16.mxu0 0
    %104 = vmatpush1.bf16.msra.mxu0 0
    %105 = vmatprep.subr.bf16.mxu0 0
    %106 = vmatpush1.bf16.msra.mxu0 %v86
    %107 = vmatprep.subr.bf16.mxu0 0
    %108 = vmatpush1.bf16.msra.mxu0 %v85
    %109 = vmatprep.subr.bf16.mxu0 0
    %110 = vmatpush2.bf16.msra.mxu0 0
    %111 = vmatprep.subr.bf16.mxu0 0
    %112 = vmatpush2.bf16.msra.mxu0 0
    %113 = vmatprep.subr.bf16.mxu0 0
    %114 = vmatpush2.bf16.msra.mxu0 0
    %115 = vmatprep.subr.bf16.mxu0 0
    %116 = vmatpush2.bf16.msra.mxu0 0
    %117 = vmatprep.subr.bf16.mxu0 0
    %118 = vmatpush2.bf16.msra.mxu0 0
    %119 = vmatprep.subr.bf16.mxu0 0
    %120 = vmatpush2.bf16.msra.mxu0 0
    %121 = vmatprep.subr.bf16.mxu0 0
    %122 = vmatpush2.bf16.msra.mxu0 0
    %123 = vmatprep.subr.bf16.mxu0 0
    %124 = vmatpush2.bf16.msra.mxu0 0
    %125 = vmatprep.mubr.bf16.mxu0 0
    %126 = vmatmul.mubr.bf16.gmra.mxu0 %v91
    %v127 = vpop.f32.mrf.mxu0
    %v128 = vadd.f32 %v75, %v127
    %v129 = vpop.f32.mrf.mxu0
    %v130 = vpop.f32.mrf.mxu0
    %v131 = vadd.f32 %v75, %v130
    %v132 = vpop.f32.mrf.mxu0
    %133 = vdwg.mxu0
    %v134 = vlaneseq
    %v135 = vshrl.u32 %v134, 7
    %v136 = vlaneseq
    %v137 = vand.u32 %v136, 127
    %vm138 = vcmp.le.s32.totalorder %v137, %v135
    %v139 = vld [vmem:[%s4] sm:$0x1]
    %v141 = vlaneseq
    %v142 = vshrl.u32 %v141, 7
    %v143 = vsub.s32 0, %v142
    %v144 = vrot.slane %v139, %v143
    %v146 = vpack.c.bf16 %v128, %v128
    %v147 = vpack.c.bf16 %v131, %v131
    %149 = vrot.lane.b32.xlu0 %v146, 96
    %v150 = vpop.permute.xlu0 %149
    %vm151 = vcmask 64512
    %v153 = vsel %vm151, %v146, 0
    %v156 = vsel %vm151, %v150, 0
    %158 = vmatprep.subr.bf16.mxu0 0
    %159 = vmatpush1.bf16.xpose.msra.mxu0 0
    %160 = vmatprep.subr.bf16.mxu0 0
    %161 = vmatpush1.bf16.xpose.msra.mxu0 0
    %162 = vmatprep.subr.bf16.mxu0 0
    %163 = vmatpush1.bf16.xpose.msra.mxu0 0
    %164 = vmatprep.subr.bf16.mxu0 0
    %165 = vmatpush1.bf16.xpose.msra.mxu0 0
    %166 = vmatprep.subr.bf16.mxu0 0
    %167 = vmatpush1.bf16.xpose.msra.mxu0 0
    %168 = vmatprep.subr.bf16.mxu0 0
    %169 = vmatpush1.bf16.xpose.msra.mxu0 0
    %170 = vmatprep.subr.bf16.mxu0 0
    %171 = vmatpush1.bf16.xpose.msra.mxu0 0
    %172 = vmatprep.subr.bf16.mxu0 0
    %173 = vmatpush1.bf16.xpose.msra.mxu0 %v156
    %174 = vmatprep.subr.bf16.mxu0 0
    %175 = vmatpush2.bf16.xpose.msra.mxu0 0
    %176 = vmatprep.subr.bf16.mxu0 0
    %177 = vmatpush2.bf16.xpose.msra.mxu0 0
    %178 = vmatprep.subr.bf16.mxu0 0
    %179 = vmatpush2.bf16.xpose.msra.mxu0 0
    %180 = vmatprep.subr.bf16.mxu0 0
    %181 = vmatpush2.bf16.xpose.msra.mxu0 0
    %182 = vmatprep.subr.bf16.mxu0 0
    %183 = vmatpush2.bf16.xpose.msra.mxu0 0
    %184 = vmatprep.subr.bf16.mxu0 0
    %185 = vmatpush2.bf16.xpose.msra.mxu0 0
    %186 = vmatprep.subr.bf16.mxu0 0
    %187 = vmatpush2.bf16.xpose.msra.mxu0 0
    %188 = vmatprep.subr.bf16.mxu0 0
    %189 = vmatpush2.bf16.xpose.msra.mxu0 0
    %190 = vmatprep.mubr.bf16.mxu0 0
    %191 = vmatmul.mubr.bf16.gmra.mxu0 %v153
    %v192 = vpop.f32.mrf.mxu0
    %v193 = vadd.f32 0.0, %v192
    %v194 = vpop.f32.mrf.mxu0
    %v195 = vpop.f32.mrf.mxu0
    %v196 = vpop.f32.mrf.mxu0
    %197 = vdwg.mxu0
    %199 = vrot.lane.b32.xlu0 %v147, 96
    %v200 = vpop.permute.xlu0 %199
    %v202 = vsel %vm151, %v147, 0
    %v205 = vsel %vm151, %v200, 0
    %207 = vmatprep.subr.bf16.mxu0 0
    %208 = vmatpush1.bf16.xpose.msra.mxu0 0
    %209 = vmatprep.subr.bf16.mxu0 0
    %210 = vmatpush1.bf16.xpose.msra.mxu0 0
    %211 = vmatprep.subr.bf16.mxu0 0
    %212 = vmatpush1.bf16.xpose.msra.mxu0 0
    %213 = vmatprep.subr.bf16.mxu0 0
    %214 = vmatpush1.bf16.xpose.msra.mxu0 0
    %215 = vmatprep.subr.bf16.mxu0 0
    %216 = vmatpush1.bf16.xpose.msra.mxu0 0
    %217 = vmatprep.subr.bf16.mxu0 0
    %218 = vmatpush1.bf16.xpose.msra.mxu0 0
    %219 = vmatprep.subr.bf16.mxu0 0
    %220 = vmatpush1.bf16.xpose.msra.mxu0 0
    %221 = vmatprep.subr.bf16.mxu0 0
    %222 = vmatpush1.bf16.xpose.msra.mxu0 %v205
    %223 = vmatprep.subr.bf16.mxu0 0
    %224 = vmatpush2.bf16.xpose.msra.mxu0 0
    %225 = vmatprep.subr.bf16.mxu0 0
    %226 = vmatpush2.bf16.xpose.msra.mxu0 0
    %227 = vmatprep.subr.bf16.mxu0 0
    %228 = vmatpush2.bf16.xpose.msra.mxu0 0
    %229 = vmatprep.subr.bf16.mxu0 0
    %230 = vmatpush2.bf16.xpose.msra.mxu0 0
    %231 = vmatprep.subr.bf16.mxu0 0
    %232 = vmatpush2.bf16.xpose.msra.mxu0 0
    %233 = vmatprep.subr.bf16.mxu0 0
    %234 = vmatpush2.bf16.xpose.msra.mxu0 0
    %235 = vmatprep.subr.bf16.mxu0 0
    %236 = vmatpush2.bf16.xpose.msra.mxu0 0
    %237 = vmatprep.subr.bf16.mxu0 0
    %238 = vmatpush2.bf16.xpose.msra.mxu0 0
    %239 = vmatprep.mubr.bf16.mxu0 0
    %240 = vmatmul.mubr.bf16.gmra.mxu0 %v202
    %v241 = vpop.f32.mrf.mxu0
    %v242 = vadd.f32 0.0, %v241
    %v243 = vpop.f32.mrf.mxu0
    %v244 = vpop.f32.mrf.mxu0
    %v245 = vpop.f32.mrf.mxu0
    %246 = vdwg.mxu0
    %v247 = vmul.f32 %v193, 0.35355338
    %v248 = vmul.f32 %v242, 0.35355338
    %v249 = vsel %vm138, %v247, -3.4028235e+38
    %v250 = vsel %vm138, %v248, -3.4028235e+38
    %v251 = vsel %vm151, %v249, -inf
    %252 = vmax.xlane.f32.xlu0 %v251
    %v253 = vpop.xlane.xlu0 %252
    %v254 = vsel %vm151, %v250, -inf
    %255 = vmax.xlane.f32.xlu0 %v254
    %v256 = vpop.xlane.xlu0 %255
    %v257 = vsub.f32 %v249, %v253
    %v258 = vsub.f32 %v250, %v256
    %v259 = vmul.f32 %v257, 1.442695
    %v260 = vpow.pop %v259
    %v261 = vmul.f32 %v258, 1.442695
    %v262 = vpow.pop %v261
    %v263 = vsel %vm151, %v260, 0.0
    %264 = vadd.xlane.f32.xlu0 %v263
    %v265 = vpop.xlane.xlu0 %264
    %v266 = vsel %vm151, %v262, 0.0
    %267 = vadd.xlane.f32.xlu0 %v266
    %v268 = vpop.xlane.xlu0 %267
    %v269 = vrcp.pop %v265
    %v270 = vrcp.pop %v268
    %v271 = vmul.f32 %v260, %v269
    %v272 = vmul.f32 %v262, %v270
    %v273 = vpack.c.bf16 %v271, %v271
    %v274 = vpack.c.bf16 %v272, %v272
    %275 = vrot.lane.b32.xlu0 %v146, 64
    %v276 = vpop.permute.xlu0 %275
    %v278 = vsel %vm151, %v273, 0
    %vm280 = vcmask 1043456
    %v282 = vsel %vm280, %v276, 0
    %284 = vmatprep.subr.bf16.mxu0 0
    %285 = vmatpush1.bf16.msra.mxu0 0
    %286 = vmatprep.subr.bf16.mxu0 0
    %287 = vmatpush1.bf16.msra.mxu0 0
    %288 = vmatprep.subr.bf16.mxu0 0
    %289 = vmatpush1.bf16.msra.mxu0 0
    %290 = vmatprep.subr.bf16.mxu0 0
    %291 = vmatpush1.bf16.msra.mxu0 0
    %292 = vmatprep.subr.bf16.mxu0 0
    %293 = vmatpush1.bf16.msra.mxu0 0
    %294 = vmatprep.subr.bf16.mxu0 0
    %295 = vmatpush1.bf16.msra.mxu0 0
    %296 = vmatprep.subr.bf16.mxu0 0
    %297 = vmatpush1.bf16.msra.mxu0 0
    %298 = vmatprep.subr.bf16.mxu0 0
    %299 = vmatpush1.bf16.msra.mxu0 %v282
    %300 = vmatprep.subr.bf16.mxu0 0
    %301 = vmatpush2.bf16.msra.mxu0 0
    %302 = vmatprep.subr.bf16.mxu0 0
    %303 = vmatpush2.bf16.msra.mxu0 0
    %304 = vmatprep.subr.bf16.mxu0 0
    %305 = vmatpush2.bf16.msra.mxu0 0
    %306 = vmatprep.subr.bf16.mxu0 0
    %307 = vmatpush2.bf16.msra.mxu0 0
    %308 = vmatprep.subr.bf16.mxu0 0
    %309 = vmatpush2.bf16.msra.mxu0 0
    %310 = vmatprep.subr.bf16.mxu0 0
    %311 = vmatpush2.bf16.msra.mxu0 0
    %312 = vmatprep.subr.bf16.mxu0 0
    %313 = vmatpush2.bf16.msra.mxu0 0
    %314 = vmatprep.subr.bf16.mxu0 0
    %315 = vmatpush2.bf16.msra.mxu0 0
    %316 = vmatprep.mubr.bf16.mxu0 0
    %317 = vmatmul.mubr.bf16.gmra.mxu0 %v278
    %v318 = vpop.f32.mrf.mxu0
    %v319 = vadd.f32 0.0, %v318
    %v320 = vpop.f32.mrf.mxu0
    %v321 = vpop.f32.mrf.mxu0
    %v322 = vpop.f32.mrf.mxu0
    %323 = vdwg.mxu0
    %324 = vrot.lane.b32.xlu0 %v147, 64
    %v325 = vpop.permute.xlu0 %324
    %v327 = vsel %vm151, %v274, 0
    %v330 = vsel %vm280, %v325, 0
    %332 = vmatprep.subr.bf16.mxu0 0
    %333 = vmatpush1.bf16.msra.mxu0 0
    %334 = vmatprep.subr.bf16.mxu0 0
    %335 = vmatpush1.bf16.msra.mxu0 0
    %336 = vmatprep.subr.bf16.mxu0 0
    %337 = vmatpush1.bf16.msra.mxu0 0
    %338 = vmatprep.subr.bf16.mxu0 0
    %339 = vmatpush1.bf16.msra.mxu0 0
    %340 = vmatprep.subr.bf16.mxu0 0
    %341 = vmatpush1.bf16.msra.mxu0 0
    %342 = vmatprep.subr.bf16.mxu0 0
    %343 = vmatpush1.bf16.msra.mxu0 0
    %344 = vmatprep.subr.bf16.mxu0 0
    %345 = vmatpush1.bf16.msra.mxu0 0
    %346 = vmatprep.subr.bf16.mxu0 0
    %347 = vmatpush1.bf16.msra.mxu0 %v330
    %348 = vmatprep.subr.bf16.mxu0 0
    %349 = vmatpush2.bf16.msra.mxu0 0
    %350 = vmatprep.subr.bf16.mxu0 0
    %351 = vmatpush2.bf16.msra.mxu0 0
    %352 = vmatprep.subr.bf16.mxu0 0
    %353 = vmatpush2.bf16.msra.mxu0 0
    %354 = vmatprep.subr.bf16.mxu0 0
    %355 = vmatpush2.bf16.msra.mxu0 0
    %356 = vmatprep.subr.bf16.mxu0 0
    %357 = vmatpush2.bf16.msra.mxu0 0
    %358 = vmatprep.subr.bf16.mxu0 0
    %359 = vmatpush2.bf16.msra.mxu0 0
    %360 = vmatprep.subr.bf16.mxu0 0
    %361 = vmatpush2.bf16.msra.mxu0 0
    %362 = vmatprep.subr.bf16.mxu0 0
    %363 = vmatpush2.bf16.msra.mxu0 0
    %364 = vmatprep.mubr.bf16.mxu0 0
    %365 = vmatmul.mubr.bf16.gmra.mxu0 %v327
    %v366 = vpop.f32.mrf.mxu0
    %v367 = vadd.f32 0.0, %v366
    %v368 = vpop.f32.mrf.mxu0
    %v369 = vpop.f32.mrf.mxu0
    %v370 = vpop.f32.mrf.mxu0
    %371 = vdwg.mxu0
    %v372 = vpack.c.bf16 %v367, %v319
    %v373 = vld [vmem:[#allocation7] sm:$0xf]
    %v375 = vsel %vm151, %v372, 0
    %v378 = vsel %vm280, %v373, 0
    %380 = vmatprep.subr.bf16.mxu0 0
    %381 = vmatpush1.bf16.msra.mxu0 0
    %382 = vmatprep.subr.bf16.mxu0 0
    %383 = vmatpush1.bf16.msra.mxu0 0
    %384 = vmatprep.subr.bf16.mxu0 0
    %385 = vmatpush1.bf16.msra.mxu0 0
    %386 = vmatprep.subr.bf16.mxu0 0
    %387 = vmatpush1.bf16.msra.mxu0 0
    %388 = vmatprep.subr.bf16.mxu0 0
    %389 = vmatpush1.bf16.msra.mxu0 0
    %390 = vmatprep.subr.bf16.mxu0 0
    %391 = vmatpush1.bf16.msra.mxu0 0
    %392 = vmatprep.subr.bf16.mxu0 0
    %393 = vmatpush1.bf16.msra.mxu0 0
    %394 = vmatprep.subr.bf16.mxu0 0
    %395 = vmatpush1.bf16.msra.mxu0 %v378
    %396 = vmatprep.subr.bf16.mxu0 0
    %397 = vmatpush2.bf16.msra.mxu0 0
    %398 = vmatprep.subr.bf16.mxu0 0
    %399 = vmatpush2.bf16.msra.mxu0 0
    %400 = vmatprep.subr.bf16.mxu0 0
    %401 = vmatpush2.bf16.msra.mxu0 0
    %402 = vmatprep.subr.bf16.mxu0 0
    %403 = vmatpush2.bf16.msra.mxu0 0
    %404 = vmatprep.subr.bf16.mxu0 0
    %405 = vmatpush2.bf16.msra.mxu0 0
    %406 = vmatprep.subr.bf16.mxu0 0
    %407 = vmatpush2.bf16.msra.mxu0 0
    %408 = vmatprep.subr.bf16.mxu0 0
    %409 = vmatpush2.bf16.msra.mxu0 0
    %410 = vmatprep.subr.bf16.mxu0 0
    %411 = vmatpush2.bf16.msra.mxu0 0
    %412 = vmatprep.mubr.bf16.mxu0 0
    %413 = vmatmul.mubr.bf16.gmra.mxu0 %v375
    %v414 = vpop.f32.mrf.mxu0
    %v415 = vadd.f32 0.0, %v414
    %v416 = vpop.f32.mrf.mxu0
    %v417 = vpop.f32.mrf.mxu0
    %v418 = vadd.f32 0.0, %v417
    %v419 = vpop.f32.mrf.mxu0
    %420 = vdwg.mxu0
    %v421 = vadd.f32 %v144, %v415
    %v422 = vadd.f32 %v144, %v418
    %423 = vrot.lane.b32.xlu0 %v146, 120
    %v424 = vpop.permute.xlu0 %423
    %425 = vrot.lane.b32.xlu0 %v146, 88
    %v426 = vpop.permute.xlu0 %425
    %v428 = vsel %vm151, %v424, 0
    %v431 = vsel %vm151, %v426, 0
    %433 = vmatprep.subr.bf16.mxu0 0
    %434 = vmatpush1.bf16.xpose.msra.mxu0 0
    %435 = vmatprep.subr.bf16.mxu0 0
    %436 = vmatpush1.bf16.xpose.msra.mxu0 0
    %437 = vmatprep.subr.bf16.mxu0 0
    %438 = vmatpush1.bf16.xpose.msra.mxu0 0
    %439 = vmatprep.subr.bf16.mxu0 0
    %440 = vmatpush1.bf16.xpose.msra.mxu0 0
    %441 = vmatprep.subr.bf16.mxu0 0
    %442 = vmatpush1.bf16.xpose.msra.mxu0 0
    %443 = vmatprep.subr.bf16.mxu0 0
    %444 = vmatpush1.bf16.xpose.msra.mxu0 0
    %445 = vmatprep.subr.bf16.mxu0 0
    %446 = vmatpush1.bf16.xpose.msra.mxu0 0
    %447 = vmatprep.subr.bf16.mxu0 0
    %448 = vmatpush1.bf16.xpose.msra.mxu0 %v431
    %449 = vmatprep.subr.bf16.mxu0 0
    %450 = vmatpush2.bf16.xpose.msra.mxu0 0
    %451 = vmatprep.subr.bf16.mxu0 0
    %452 = vmatpush2.bf16.xpose.msra.mxu0 0
    %453 = vmatprep.subr.bf16.mxu0 0
    %454 = vmatpush2.bf16.xpose.msra.mxu0 0
    %455 = vmatprep.subr.bf16.mxu0 0
    %456 = vmatpush2.bf16.xpose.msra.mxu0 0
    %457 = vmatprep.subr.bf16.mxu0 0
    %458 = vmatpush2.bf16.xpose.msra.mxu0 0
    %459 = vmatprep.subr.bf16.mxu0 0
    %460 = vmatpush2.bf16.xpose.msra.mxu0 0
    %461 = vmatprep.subr.bf16.mxu0 0
    %462 = vmatpush2.bf16.xpose.msra.mxu0 0
    %463 = vmatprep.subr.bf16.mxu0 0
    %464 = vmatpush2.bf16.xpose.msra.mxu0 0
    %465 = vmatprep.mubr.bf16.mxu0 0
    %466 = vmatmul.mubr.bf16.gmra.mxu0 %v428
    %v467 = vpop.f32.mrf.mxu0
    %v468 = vadd.f32 0.0, %v467
    %v469 = vpop.f32.mrf.mxu0
    %v470 = vpop.f32.mrf.mxu0
    %v471 = vpop.f32.mrf.mxu0
    %472 = vdwg.mxu0
    %473 = vrot.lane.b32.xlu0 %v147, 120
    %v474 = vpop.permute.xlu0 %473
    %475 = vrot.lane.b32.xlu0 %v147, 88
    %v476 = vpop.permute.xlu0 %475
    %v478 = vsel %vm151, %v474, 0
    %v481 = vsel %vm151, %v476, 0
    %483 = vmatprep.subr.bf16.mxu0 0
    %484 = vmatpush1.bf16.xpose.msra.mxu0 0
    %485 = vmatprep.subr.bf16.mxu0 0
    %486 = vmatpush1.bf16.xpose.msra.mxu0 0
    %487 = vmatprep.subr.bf16.mxu0 0
    %488 = vmatpush1.bf16.xpose.msra.mxu0 0
    %489 = vmatprep.subr.bf16.mxu0 0
    %490 = vmatpush1.bf16.xpose.msra.mxu0 0
    %491 = vmatprep.subr.bf16.mxu0 0
    %492 = vmatpush1.bf16.xpose.msra.mxu0 0
    %493 = vmatprep.subr.bf16.mxu0 0
    %494 = vmatpush1.bf16.xpose.msra.mxu0 0
    %495 = vmatprep.subr.bf16.mxu0 0
    %496 = vmatpush1.bf16.xpose.msra.mxu0 0
    %497 = vmatprep.subr.bf16.mxu0 0
    %498 = vmatpush1.bf16.xpose.msra.mxu0 %v481
    %499 = vmatprep.subr.bf16.mxu0 0
    %500 = vmatpush2.bf16.xpose.msra.mxu0 0
    %501 = vmatprep.subr.bf16.mxu0 0
    %502 = vmatpush2.bf16.xpose.msra.mxu0 0
    %503 = vmatprep.subr.bf16.mxu0 0
    %504 = vmatpush2.bf16.xpose.msra.mxu0 0
    %505 = vmatprep.subr.bf16.mxu0 0
    %506 = vmatpush2.bf16.xpose.msra.mxu0 0
    %507 = vmatprep.subr.bf16.mxu0 0
    %508 = vmatpush2.bf16.xpose.msra.mxu0 0
    %509 = vmatprep.subr.bf16.mxu0 0
    %510 = vmatpush2.bf16.xpose.msra.mxu0 0
    %511 = vmatprep.subr.bf16.mxu0 0
    %512 = vmatpush2.bf16.xpose.msra.mxu0 0
    %513 = vmatprep.subr.bf16.mxu0 0
    %514 = vmatpush2.bf16.xpose.msra.mxu0 0
    %515 = vmatprep.mubr.bf16.mxu0 0
    %516 = vmatmul.mubr.bf16.gmra.mxu0 %v478
    %v517 = vpop.f32.mrf.mxu0
    %v518 = vadd.f32 0.0, %v517
    %v519 = vpop.f32.mrf.mxu0
    %v520 = vpop.f32.mrf.mxu0
    %v521 = vpop.f32.mrf.mxu0
    %522 = vdwg.mxu0
    %v523 = vmul.f32 %v468, 0.35355338
    %v524 = vmul.f32 %v518, 0.35355338
    %v525 = vsel %vm138, %v523, -3.4028235e+38
    %v526 = vsel %vm138, %v524, -3.4028235e+38
    %v527 = vsel %vm151, %v525, -inf
    %528 = vmax.xlane.f32.xlu0 %v527
    %v529 = vpop.xlane.xlu0 %528
    %v530 = vsel %vm151, %v526, -inf
    %531 = vmax.xlane.f32.xlu0 %v530
    %v532 = vpop.xlane.xlu0 %531
    %v533 = vsub.f32 %v525, %v529
    %v534 = vsub.f32 %v526, %v532
    %v535 = vmul.f32 %v533, 1.442695
    %v536 = vpow.pop %v535
    %v537 = vmul.f32 %v534, 1.442695
    %v538 = vpow.pop %v537
    %v539 = vsel %vm151, %v536, 0.0
    %540 = vadd.xlane.f32.xlu0 %v539
    %v541 = vpop.xlane.xlu0 %540
    %v542 = vsel %vm151, %v538, 0.0
    %543 = vadd.xlane.f32.xlu0 %v542
    %v544 = vpop.xlane.xlu0 %543
    %v545 = vrcp.pop %v541
    %v546 = vrcp.pop %v544
    %v547 = vmul.f32 %v536, %v545
    %v548 = vmul.f32 %v538, %v546
    %v549 = vpack.c.bf16 %v547, %v547
    %v550 = vpack.c.bf16 %v548, %v548
    %551 = vrot.lane.b32.xlu0 %v146, 56
    %v552 = vpop.permute.xlu0 %551
    %v554 = vsel %vm151, %v549, 0
    %v557 = vsel %vm280, %v552, 0
    %559 = vmatprep.subr.bf16.mxu0 0
    %560 = vmatpush1.bf16.msra.mxu0 0
    %561 = vmatprep.subr.bf16.mxu0 0
    %562 = vmatpush1.bf16.msra.mxu0 0
    %563 = vmatprep.subr.bf16.mxu0 0
    %564 = vmatpush1.bf16.msra.mxu0 0
    %565 = vmatprep.subr.bf16.mxu0 0
    %566 = vmatpush1.bf16.msra.mxu0 0
    %567 = vmatprep.subr.bf16.mxu0 0
    %568 = vmatpush1.bf16.msra.mxu0 0
    %569 = vmatprep.subr.bf16.mxu0 0
    %570 = vmatpush1.bf16.msra.mxu0 0
    %571 = vmatprep.subr.bf16.mxu0 0
    %572 = vmatpush1.bf16.msra.mxu0 0
    %573 = vmatprep.subr.bf16.mxu0 0
    %574 = vmatpush1.bf16.msra.mxu0 %v557
    %575 = vmatprep.subr.bf16.mxu0 0
    %576 = vmatpush2.bf16.msra.mxu0 0
    %577 = vmatprep.subr.bf16.mxu0 0
    %578 = vmatpush2.bf16.msra.mxu0 0
    %579 = vmatprep.subr.bf16.mxu0 0
    %580 = vmatpush2.bf16.msra.mxu0 0
    %581 = vmatprep.subr.bf16.mxu0 0
    %582 = vmatpush2.bf16.msra.mxu0 0
    %583 = vmatprep.subr.bf16.mxu0 0
    %584 = vmatpush2.bf16.msra.mxu0 0
    %585 = vmatprep.subr.bf16.mxu0 0
    %586 = vmatpush2.bf16.msra.mxu0 0
    %587 = vmatprep.subr.bf16.mxu0 0
    %588 = vmatpush2.bf16.msra.mxu0 0
    %589 = vmatprep.subr.bf16.mxu0 0
    %590 = vmatpush2.bf16.msra.mxu0 0
    %591 = vmatprep.mubr.bf16.mxu0 0
    %592 = vmatmul.mubr.bf16.gmra.mxu0 %v554
    %v593 = vpop.f32.mrf.mxu0
    %v594 = vadd.f32 0.0, %v593
    %v595 = vpop.f32.mrf.mxu0
    %v596 = vpop.f32.mrf.mxu0
    %v597 = vpop.f32.mrf.mxu0
    %598 = vdwg.mxu0
    %599 = vrot.lane.b32.xlu0 %v147, 56
    %v600 = vpop.permute.xlu0 %599
    %v602 = vsel %vm151, %v550, 0
    %v605 = vsel %vm280, %v600, 0
    %607 = vmatprep.subr.bf16.mxu0 0
    %608 = vmatpush1.bf16.msra.mxu0 0
    %609 = vmatprep.subr.bf16.mxu0 0
    %610 = vmatpush1.bf16.msra.mxu0 0
    %611 = vmatprep.subr.bf16.mxu0 0
    %612 = vmatpush1.bf16.msra.mxu0 0
    %613 = vmatprep.subr.bf16.mxu0 0
    %614 = vmatpush1.bf16.msra.mxu0 0
    %615 = vmatprep.subr.bf16.mxu0 0
    %616 = vmatpush1.bf16.msra.mxu0 0
    %617 = vmatprep.subr.bf16.mxu0 0
    %618 = vmatpush1.bf16.msra.mxu0 0
    %619 = vmatprep.subr.bf16.mxu0 0
    %620 = vmatpush1.bf16.msra.mxu0 0
    %621 = vmatprep.subr.bf16.mxu0 0
    %622 = vmatpush1.bf16.msra.mxu0 %v605
    %623 = vmatprep.subr.bf16.mxu0 0
    %624 = vmatpush2.bf16.msra.mxu0 0
    %625 = vmatprep.subr.bf16.mxu0 0
    %626 = vmatpush2.bf16.msra.mxu0 0
    %627 = vmatprep.subr.bf16.mxu0 0
    %628 = vmatpush2.bf16.msra.mxu0 0
    %629 = vmatprep.subr.bf16.mxu0 0
    %630 = vmatpush2.bf16.msra.mxu0 0
    %631 = vmatprep.subr.bf16.mxu0 0
    %632 = vmatpush2.bf16.msra.mxu0 0
    %633 = vmatprep.subr.bf16.mxu0 0
    %634 = vmatpush2.bf16.msra.mxu0 0
    %635 = vmatprep.subr.bf16.mxu0 0
    %636 = vmatpush2.bf16.msra.mxu0 0
    %637 = vmatprep.subr.bf16.mxu0 0
    %638 = vmatpush2.bf16.msra.mxu0 0
    %639 = vmatprep.mubr.bf16.mxu0 0
    %640 = vmatmul.mubr.bf16.gmra.mxu0 %v602
    %v641 = vpop.f32.mrf.mxu0
    %v642 = vadd.f32 0.0, %v641
    %v643 = vpop.f32.mrf.mxu0
    %v644 = vpop.f32.mrf.mxu0
    %v645 = vpop.f32.mrf.mxu0
    %646 = vdwg.mxu0
    %v647 = vpack.c.bf16 %v642, %v594
    %v648 = vld [vmem:[#allocation7 + $0x4] sm:$0xf]
    %v650 = vsel %vm151, %v647, 0
    %v653 = vsel %vm280, %v648, 0
    %655 = vmatprep.subr.bf16.mxu0 0
    %656 = vmatpush1.bf16.msra.mxu0 0
    %657 = vmatprep.subr.bf16.mxu0 0
    %658 = vmatpush1.bf16.msra.mxu0 0
    %659 = vmatprep.subr.bf16.mxu0 0
    %660 = vmatpush1.bf16.msra.mxu0 0
    %661 = vmatprep.subr.bf16.mxu0 0
    %662 = vmatpush1.bf16.msra.mxu0 0
    %663 = vmatprep.subr.bf16.mxu0 0
    %664 = vmatpush1.bf16.msra.mxu0 0
    %665 = vmatprep.subr.bf16.mxu0 0
    %666 = vmatpush1.bf16.msra.mxu0 0
    %667 = vmatprep.subr.bf16.mxu0 0
    %668 = vmatpush1.bf16.msra.mxu0 0
    %669 = vmatprep.subr.bf16.mxu0 0
    %670 = vmatpush1.bf16.msra.mxu0 %v653
    %671 = vmatprep.subr.bf16.mxu0 0
    %672 = vmatpush2.bf16.msra.mxu0 0
    %673 = vmatprep.subr.bf16.mxu0 0
    %674 = vmatpush2.bf16.msra.mxu0 0
    %675 = vmatprep.subr.bf16.mxu0 0
    %676 = vmatpush2.bf16.msra.mxu0 0
    %677 = vmatprep.subr.bf16.mxu0 0
    %678 = vmatpush2.bf16.msra.mxu0 0
    %679 = vmatprep.subr.bf16.mxu0 0
    %680 = vmatpush2.bf16.msra.mxu0 0
    %681 = vmatprep.subr.bf16.mxu0 0
    %682 = vmatpush2.bf16.msra.mxu0 0
    %683 = vmatprep.subr.bf16.mxu0 0
    %684 = vmatpush2.bf16.msra.mxu0 0
    %685 = vmatprep.subr.bf16.mxu0 0
    %686 = vmatpush2.bf16.msra.mxu0 0
    %687 = vmatprep.mubr.bf16.mxu0 0
    %688 = vmatmul.mubr.bf16.gmra.mxu0 %v650
    %v689 = vpop.f32.mrf.mxu0
    %v690 = vadd.f32 0.0, %v689
    %v691 = vpop.f32.mrf.mxu0
    %v692 = vpop.f32.mrf.mxu0
    %v693 = vadd.f32 0.0, %v692
    %v694 = vpop.f32.mrf.mxu0
    %695 = vdwg.mxu0
    %v696 = vadd.f32 %v421, %v690
    %v697 = vadd.f32 %v422, %v693
    %698 = vrot.lane.b32.xlu0 %v146, 112
    %v699 = vpop.permute.xlu0 %698
    %700 = vrot.lane.b32.xlu0 %v146, 80
    %v701 = vpop.permute.xlu0 %700
    %v703 = vsel %vm151, %v699, 0
    %v706 = vsel %vm151, %v701, 0
    %708 = vmatprep.subr.bf16.mxu0 0
    %709 = vmatpush1.bf16.xpose.msra.mxu0 0
    %710 = vmatprep.subr.bf16.mxu0 0
    %711 = vmatpush1.bf16.xpose.msra.mxu0 0
    %712 = vmatprep.subr.bf16.mxu0 0
    %713 = vmatpush1.bf16.xpose.msra.mxu0 0
    %714 = vmatprep.subr.bf16.mxu0 0
    %715 = vmatpush1.bf16.xpose.msra.mxu0 0
    %716 = vmatprep.subr.bf16.mxu0 0
    %717 = vmatpush1.bf16.xpose.msra.mxu0 0
    %718 = vmatprep.subr.bf16.mxu0 0
    %719 = vmatpush1.bf16.xpose.msra.mxu0 0
    %720 = vmatprep.subr.bf16.mxu0 0
    %721 = vmatpush1.bf16.xpose.msra.mxu0 0
    %722 = vmatprep.subr.bf16.mxu0 0
    %723 = vmatpush1.bf16.xpose.msra.mxu0 %v706
    %724 = vmatprep.subr.bf16.mxu0 0
    %725 = vmatpush2.bf16.xpose.msra.mxu0 0
    %726 = vmatprep.subr.bf16.mxu0 0
    %727 = vmatpush2.bf16.xpose.msra.mxu0 0
    %728 = vmatprep.subr.bf16.mxu0 0
    %729 = vmatpush2.bf16.xpose.msra.mxu0 0
    %730 = vmatprep.subr.bf16.mxu0 0
    %731 = vmatpush2.bf16.xpose.msra.mxu0 0
    %732 = vmatprep.subr.bf16.mxu0 0
    %733 = vmatpush2.bf16.xpose.msra.mxu0 0
    %734 = vmatprep.subr.bf16.mxu0 0
    %735 = vmatpush2.bf16.xpose.msra.mxu0 0
    %736 = vmatprep.subr.bf16.mxu0 0
    %737 = vmatpush2.bf16.xpose.msra.mxu0 0
    %738 = vmatprep.subr.bf16.mxu0 0
    %739 = vmatpush2.bf16.xpose.msra.mxu0 0
    %740 = vmatprep.mubr.bf16.mxu0 0
    %741 = vmatmul.mubr.bf16.gmra.mxu0 %v703
    %v742 = vpop.f32.mrf.mxu0
    %v743 = vadd.f32 0.0, %v742
    %v744 = vpop.f32.mrf.mxu0
    %v745 = vpop.f32.mrf.mxu0
    %v746 = vpop.f32.mrf.mxu0
    %747 = vdwg.mxu0
    %748 = vrot.lane.b32.xlu0 %v147, 112
    %v749 = vpop.permute.xlu0 %748
    %750 = vrot.lane.b32.xlu0 %v147, 80
    %v751 = vpop.permute.xlu0 %750
    %v753 = vsel %vm151, %v749, 0
    %v756 = vsel %vm151, %v751, 0
    %758 = vmatprep.subr.bf16.mxu0 0
    %759 = vmatpush1.bf16.xpose.msra.mxu0 0
    %760 = vmatprep.subr.bf16.mxu0 0
    %761 = vmatpush1.bf16.xpose.msra.mxu0 0
    %762 = vmatprep.subr.bf16.mxu0 0
    %763 = vmatpush1.bf16.xpose.msra.mxu0 0
    %764 = vmatprep.subr.bf16.mxu0 0
    %765 = vmatpush1.bf16.xpose.msra.mxu0 0
    %766 = vmatprep.subr.bf16.mxu0 0
    %767 = vmatpush1.bf16.xpose.msra.mxu0 0
    %768 = vmatprep.subr.bf16.mxu0 0
    %769 = vmatpush1.bf16.xpose.msra.mxu0 0
    %770 = vmatprep.subr.bf16.mxu0 0
    %771 = vmatpush1.bf16.xpose.msra.mxu0 0
    %772 = vmatprep.subr.bf16.mxu0 0
    %773 = vmatpush1.bf16.xpose.msra.mxu0 %v756
    %774 = vmatprep.subr.bf16.mxu0 0
    %775 = vmatpush2.bf16.xpose.msra.mxu0 0
    %776 = vmatprep.subr.bf16.mxu0 0
    %777 = vmatpush2.bf16.xpose.msra.mxu0 0
    %778 = vmatprep.subr.bf16.mxu0 0
    %779 = vmatpush2.bf16.xpose.msra.mxu0 0
    %780 = vmatprep.subr.bf16.mxu0 0
    %781 = vmatpush2.bf16.xpose.msra.mxu0 0
    %782 = vmatprep.subr.bf16.mxu0 0
    %783 = vmatpush2.bf16.xpose.msra.mxu0 0
    %784 = vmatprep.subr.bf16.mxu0 0
    %785 = vmatpush2.bf16.xpose.msra.mxu0 0
    %786 = vmatprep.subr.bf16.mxu0 0
    %787 = vmatpush2.bf16.xpose.msra.mxu0 0
    %788 = vmatprep.subr.bf16.mxu0 0
    %789 = vmatpush2.bf16.xpose.msra.mxu0 0
    %790 = vmatprep.mubr.bf16.mxu0 0
    %791 = vmatmul.mubr.bf16.gmra.mxu0 %v753
    %v792 = vpop.f32.mrf.mxu0
    %v793 = vadd.f32 0.0, %v792
    %v794 = vpop.f32.mrf.mxu0
    %v795 = vpop.f32.mrf.mxu0
    %v796 = vpop.f32.mrf.mxu0
    %797 = vdwg.mxu0
    %v798 = vmul.f32 %v743, 0.35355338
    %v799 = vmul.f32 %v793, 0.35355338
    %v800 = vsel %vm138, %v798, -3.4028235e+38
    %v801 = vsel %vm138, %v799, -3.4028235e+38
    %v802 = vsel %vm151, %v800, -inf
    %803 = vmax.xlane.f32.xlu0 %v802
    %v804 = vpop.xlane.xlu0 %803
    %v805 = vsel %vm151, %v801, -inf
    %806 = vmax.xlane.f32.xlu0 %v805
    %v807 = vpop.xlane.xlu0 %806
    %v808 = vsub.f32 %v800, %v804
    %v809 = vsub.f32 %v801, %v807
    %v810 = vmul.f32 %v808, 1.442695
    %v811 = vpow.pop %v810
    %v812 = vmul.f32 %v809, 1.442695
    %v813 = vpow.pop %v812
    %v814 = vsel %vm151, %v811, 0.0
    %815 = vadd.xlane.f32.xlu0 %v814
    %v816 = vpop.xlane.xlu0 %815
    %v817 = vsel %vm151, %v813, 0.0
    %818 = vadd.xlane.f32.xlu0 %v817
    %v819 = vpop.xlane.xlu0 %818
    %v820 = vrcp.pop %v816
    %v821 = vrcp.pop %v819
    %v822 = vmul.f32 %v811, %v820
    %v823 = vmul.f32 %v813, %v821
    %v824 = vpack.c.bf16 %v822, %v822
    %v825 = vpack.c.bf16 %v823, %v823
    %826 = vrot.lane.b32.xlu0 %v146, 48
    %v827 = vpop.permute.xlu0 %826
    %v829 = vsel %vm151, %v824, 0
    %v832 = vsel %vm280, %v827, 0
    %834 = vmatprep.subr.bf16.mxu0 0
    %835 = vmatpush1.bf16.msra.mxu0 0
    %836 = vmatprep.subr.bf16.mxu0 0
    %837 = vmatpush1.bf16.msra.mxu0 0
    %838 = vmatprep.subr.bf16.mxu0 0
    %839 = vmatpush1.bf16.msra.mxu0 0
    %840 = vmatprep.subr.bf16.mxu0 0
    %841 = vmatpush1.bf16.msra.mxu0 0
    %842 = vmatprep.subr.bf16.mxu0 0
    %843 = vmatpush1.bf16.msra.mxu0 0
    %844 = vmatprep.subr.bf16.mxu0 0
    %845 = vmatpush1.bf16.msra.mxu0 0
    %846 = vmatprep.subr.bf16.mxu0 0
    %847 = vmatpush1.bf16.msra.mxu0 0
    %848 = vmatprep.subr.bf16.mxu0 0
    %849 = vmatpush1.bf16.msra.mxu0 %v832
    %850 = vmatprep.subr.bf16.mxu0 0
    %851 = vmatpush2.bf16.msra.mxu0 0
    %852 = vmatprep.subr.bf16.mxu0 0
    %853 = vmatpush2.bf16.msra.mxu0 0
    %854 = vmatprep.subr.bf16.mxu0 0
    %855 = vmatpush2.bf16.msra.mxu0 0
    %856 = vmatprep.subr.bf16.mxu0 0
    %857 = vmatpush2.bf16.msra.mxu0 0
    %858 = vmatprep.subr.bf16.mxu0 0
    %859 = vmatpush2.bf16.msra.mxu0 0
    %860 = vmatprep.subr.bf16.mxu0 0
    %861 = vmatpush2.bf16.msra.mxu0 0
    %862 = vmatprep.subr.bf16.mxu0 0
    %863 = vmatpush2.bf16.msra.mxu0 0
    %864 = vmatprep.subr.bf16.mxu0 0
    %865 = vmatpush2.bf16.msra.mxu0 0
    %866 = vmatprep.mubr.bf16.mxu0 0
    %867 = vmatmul.mubr.bf16.gmra.mxu0 %v829
    %v868 = vpop.f32.mrf.mxu0
    %v869 = vadd.f32 0.0, %v868
    %v870 = vpop.f32.mrf.mxu0
    %v871 = vpop.f32.mrf.mxu0
    %v872 = vpop.f32.mrf.mxu0
    %873 = vdwg.mxu0
    %874 = vrot.lane.b32.xlu0 %v147, 48
    %v875 = vpop.permute.xlu0 %874
    %v877 = vsel %vm151, %v825, 0
    %v880 = vsel %vm280, %v875, 0
    %882 = vmatprep.subr.bf16.mxu0 0
    %883 = vmatpush1.bf16.msra.mxu0 0
    %884 = vmatprep.subr.bf16.mxu0 0
    %885 = vmatpush1.bf16.msra.mxu0 0
    %886 = vmatprep.subr.bf16.mxu0 0
    %887 = vmatpush1.bf16.msra.mxu0 0
    %888 = vmatprep.subr.bf16.mxu0 0
    %889 = vmatpush1.bf16.msra.mxu0 0
    %890 = vmatprep.subr.bf16.mxu0 0
    %891 = vmatpush1.bf16.msra.mxu0 0
    %892 = vmatprep.subr.bf16.mxu0 0
    %893 = vmatpush1.bf16.msra.mxu0 0
    %894 = vmatprep.subr.bf16.mxu0 0
    %895 = vmatpush1.bf16.msra.mxu0 0
    %896 = vmatprep.subr.bf16.mxu0 0
    %897 = vmatpush1.bf16.msra.mxu0 %v880
    %898 = vmatprep.subr.bf16.mxu0 0
    %899 = vmatpush2.bf16.msra.mxu0 0
    %900 = vmatprep.subr.bf16.mxu0 0
    %901 = vmatpush2.bf16.msra.mxu0 0
    %902 = vmatprep.subr.bf16.mxu0 0
    %903 = vmatpush2.bf16.msra.mxu0 0
    %904 = vmatprep.subr.bf16.mxu0 0
    %905 = vmatpush2.bf16.msra.mxu0 0
    %906 = vmatprep.subr.bf16.mxu0 0
    %907 = vmatpush2.bf16.msra.mxu0 0
    %908 = vmatprep.subr.bf16.mxu0 0
    %909 = vmatpush2.bf16.msra.mxu0 0
    %910 = vmatprep.subr.bf16.mxu0 0
    %911 = vmatpush2.bf16.msra.mxu0 0
    %912 = vmatprep.subr.bf16.mxu0 0
    %913 = vmatpush2.bf16.msra.mxu0 0
    %914 = vmatprep.mubr.bf16.mxu0 0
    %915 = vmatmul.mubr.bf16.gmra.mxu0 %v877
    %v916 = vpop.f32.mrf.mxu0
    %v917 = vadd.f32 0.0, %v916
    %v918 = vpop.f32.mrf.mxu0
    %v919 = vpop.f32.mrf.mxu0
    %v920 = vpop.f32.mrf.mxu0
    %921 = vdwg.mxu0
    %v922 = vpack.c.bf16 %v917, %v869
    %v923 = vld [vmem:[#allocation7 + $0x8] sm:$0xf]
    %v925 = vsel %vm151, %v922, 0
    %v928 = vsel %vm280, %v923, 0
    %930 = vmatprep.subr.bf16.mxu0 0
    %931 = vmatpush1.bf16.msra.mxu0 0
    %932 = vmatprep.subr.bf16.mxu0 0
    %933 = vmatpush1.bf16.msra.mxu0 0
    %934 = vmatprep.subr.bf16.mxu0 0
    %935 = vmatpush1.bf16.msra.mxu0 0
    %936 = vmatprep.subr.bf16.mxu0 0
    %937 = vmatpush1.bf16.msra.mxu0 0
    %938 = vmatprep.subr.bf16.mxu0 0
    %939 = vmatpush1.bf16.msra.mxu0 0
    %940 = vmatprep.subr.bf16.mxu0 0
    %941 = vmatpush1.bf16.msra.mxu0 0
    %942 = vmatprep.subr.bf16.mxu0 0
    %943 = vmatpush1.bf16.msra.mxu0 0
    %944 = vmatprep.subr.bf16.mxu0 0
    %945 = vmatpush1.bf16.msra.mxu0 %v928
    %946 = vmatprep.subr.bf16.mxu0 0
    %947 = vmatpush2.bf16.msra.mxu0 0
    %948 = vmatprep.subr.bf16.mxu0 0
    %949 = vmatpush2.bf16.msra.mxu0 0
    %950 = vmatprep.subr.bf16.mxu0 0
    %951 = vmatpush2.bf16.msra.mxu0 0
    %952 = vmatprep.subr.bf16.mxu0 0
    %953 = vmatpush2.bf16.msra.mxu0 0
    %954 = vmatprep.subr.bf16.mxu0 0
    %955 = vmatpush2.bf16.msra.mxu0 0
    %956 = vmatprep.subr.bf16.mxu0 0
    %957 = vmatpush2.bf16.msra.mxu0 0
    %958 = vmatprep.subr.bf16.mxu0 0
    %959 = vmatpush2.bf16.msra.mxu0 0
    %960 = vmatprep.subr.bf16.mxu0 0
    %961 = vmatpush2.bf16.msra.mxu0 0
    %962 = vmatprep.mubr.bf16.mxu0 0
    %963 = vmatmul.mubr.bf16.gmra.mxu0 %v925
    %v964 = vpop.f32.mrf.mxu0
    %v965 = vadd.f32 0.0, %v964
    %v966 = vpop.f32.mrf.mxu0
    %v967 = vpop.f32.mrf.mxu0
    %v968 = vadd.f32 0.0, %v967
    %v969 = vpop.f32.mrf.mxu0
    %970 = vdwg.mxu0
    %v971 = vadd.f32 %v696, %v965
    %v972 = vadd.f32 %v697, %v968
    %973 = vrot.lane.b32.xlu0 %v146, 104
    %v974 = vpop.permute.xlu0 %973
    %975 = vrot.lane.b32.xlu0 %v146, 72
    %v976 = vpop.permute.xlu0 %975
    %v978 = vsel %vm151, %v974, 0
    %v981 = vsel %vm151, %v976, 0
    %983 = vmatprep.subr.bf16.mxu0 0
    %984 = vmatpush1.bf16.xpose.msra.mxu0 0
    %985 = vmatprep.subr.bf16.mxu0 0
    %986 = vmatpush1.bf16.xpose.msra.mxu0 0
    %987 = vmatprep.subr.bf16.mxu0 0
    %988 = vmatpush1.bf16.xpose.msra.mxu0 0
    %989 = vmatprep.subr.bf16.mxu0 0
    %990 = vmatpush1.bf16.xpose.msra.mxu0 0
    %991 = vmatprep.subr.bf16.mxu0 0
    %992 = vmatpush1.bf16.xpose.msra.mxu0 0
    %993 = vmatprep.subr.bf16.mxu0 0
    %994 = vmatpush1.bf16.xpose.msra.mxu0 0
    %995 = vmatprep.subr.bf16.mxu0 0
    %996 = vmatpush1.bf16.xpose.msra.mxu0 0
    %997 = vmatprep.subr.bf16.mxu0 0
    %998 = vmatpush1.bf16.xpose.msra.mxu0 %v981
    %999 = vmatprep.subr.bf16.mxu0 0
    %1000 = vmatpush2.bf16.xpose.msra.mxu0 0
    %1001 = vmatprep.subr.bf16.mxu0 0
    %1002 = vmatpush2.bf16.xpose.msra.mxu0 0
    %1003 = vmatprep.subr.bf16.mxu0 0
    %1004 = vmatpush2.bf16.xpose.msra.mxu0 0
    %1005 = vmatprep.subr.bf16.mxu0 0
    %1006 = vmatpush2.bf16.xpose.msra.mxu0 0
    %1007 = vmatprep.subr.bf16.mxu0 0
    %1008 = vmatpush2.bf16.xpose.msra.mxu0 0
    %1009 = vmatprep.subr.bf16.mxu0 0
    %1010 = vmatpush2.bf16.xpose.msra.mxu0 0
    %1011 = vmatprep.subr.bf16.mxu0 0
    %1012 = vmatpush2.bf16.xpose.msra.mxu0 0
    %1013 = vmatprep.subr.bf16.mxu0 0
    %1014 = vmatpush2.bf16.xpose.msra.mxu0 0
    %1015 = vmatprep.mubr.bf16.mxu0 0
    %1016 = vmatmul.mubr.bf16.gmra.mxu0 %v978
    %v1017 = vpop.f32.mrf.mxu0
    %v1018 = vadd.f32 0.0, %v1017
    %v1019 = vpop.f32.mrf.mxu0
    %v1020 = vpop.f32.mrf.mxu0
    %v1021 = vpop.f32.mrf.mxu0
    %1022 = vdwg.mxu0
    %1023 = vrot.lane.b32.xlu0 %v147, 104
    %v1024 = vpop.permute.xlu0 %1023
    %1025 = vrot.lane.b32.xlu0 %v147, 72
    %v1026 = vpop.permute.xlu0 %1025
    %v1028 = vsel %vm151, %v1024, 0
    %v1031 = vsel %vm151, %v1026, 0
    %1033 = vmatprep.subr.bf16.mxu0 0
    %1034 = vmatpush1.bf16.xpose.msra.mxu0 0
    %1035 = vmatprep.subr.bf16.mxu0 0
    %1036 = vmatpush1.bf16.xpose.msra.mxu0 0
    %1037 = vmatprep.subr.bf16.mxu0 0
    %1038 = vmatpush1.bf16.xpose.msra.mxu0 0
    %1039 = vmatprep.subr.bf16.mxu0 0
    %1040 = vmatpush1.bf16.xpose.msra.mxu0 0
    %1041 = vmatprep.subr.bf16.mxu0 0
    %1042 = vmatpush1.bf16.xpose.msra.mxu0 0
    %1043 = vmatprep.subr.bf16.mxu0 0
    %1044 = vmatpush1.bf16.xpose.msra.mxu0 0
    %1045 = vmatprep.subr.bf16.mxu0 0
    %1046 = vmatpush1.bf16.xpose.msra.mxu0 0
    %1047 = vmatprep.subr.bf16.mxu0 0
    %1048 = vmatpush1.bf16.xpose.msra.mxu0 %v1031
    %1049 = vmatprep.subr.bf16.mxu0 0
    %1050 = vmatpush2.bf16.xpose.msra.mxu0 0
    %1051 = vmatprep.subr.bf16.mxu0 0
    %1052 = vmatpush2.bf16.xpose.msra.mxu0 0
    %1053 = vmatprep.subr.bf16.mxu0 0
    %1054 = vmatpush2.bf16.xpose.msra.mxu0 0
    %1055 = vmatprep.subr.bf16.mxu0 0
    %1056 = vmatpush2.bf16.xpose.msra.mxu0 0
    %1057 = vmatprep.subr.bf16.mxu0 0
    %1058 = vmatpush2.bf16.xpose.msra.mxu0 0
    %1059 = vmatprep.subr.bf16.mxu0 0
    %1060 = vmatpush2.bf16.xpose.msra.mxu0 0
    %1061 = vmatprep.subr.bf16.mxu0 0
    %1062 = vmatpush2.bf16.xpose.msra.mxu0 0
    %1063 = vmatprep.subr.bf16.mxu0 0
    %1064 = vmatpush2.bf16.xpose.msra.mxu0 0
    %1065 = vmatprep.mubr.bf16.mxu0 0
    %1066 = vmatmul.mubr.bf16.gmra.mxu0 %v1028
    %v1067 = vpop.f32.mrf.mxu0
    %v1068 = vadd.f32 0.0, %v1067
    %v1069 = vpop.f32.mrf.mxu0
    %v1070 = vpop.f32.mrf.mxu0
    %v1071 = vpop.f32.mrf.mxu0
    %1072 = vdwg.mxu0
    %v1073 = vmul.f32 %v1018, 0.35355338
    %v1074 = vmul.f32 %v1068, 0.35355338
    %v1075 = vsel %vm138, %v1073, -3.4028235e+38
    %v1076 = vsel %vm138, %v1074, -3.4028235e+38
    %v1077 = vsel %vm151, %v1075, -inf
    %1078 = vmax.xlane.f32.xlu0 %v1077
    %v1079 = vpop.xlane.xlu0 %1078
    %v1080 = vsel %vm151, %v1076, -inf
    %1081 = vmax.xlane.f32.xlu0 %v1080
    %v1082 = vpop.xlane.xlu0 %1081
    %v1083 = vsub.f32 %v1075, %v1079
    %v1084 = vsub.f32 %v1076, %v1082
    %v1085 = vmul.f32 %v1083, 1.442695
    %v1086 = vpow.pop %v1085
    %v1087 = vmul.f32 %v1084, 1.442695
    %v1088 = vpow.pop %v1087
    %v1089 = vsel %vm151, %v1086, 0.0
    %1090 = vadd.xlane.f32.xlu0 %v1089
    %v1091 = vpop.xlane.xlu0 %1090
    %v1092 = vsel %vm151, %v1088, 0.0
    %1093 = vadd.xlane.f32.xlu0 %v1092
    %v1094 = vpop.xlane.xlu0 %1093
    %v1095 = vrcp.pop %v1091
    %v1096 = vrcp.pop %v1094
    %v1097 = vmul.f32 %v1086, %v1095
    %v1098 = vmul.f32 %v1088, %v1096
    %v1099 = vpack.c.bf16 %v1097, %v1097
    %v1100 = vpack.c.bf16 %v1098, %v1098
    %1101 = vrot.lane.b32.xlu0 %v146, 40
    %v1102 = vpop.permute.xlu0 %1101
    %v1104 = vsel %vm151, %v1099, 0
    %v1107 = vsel %vm280, %v1102, 0
    %1109 = vmatprep.subr.bf16.mxu0 0
    %1110 = vmatpush1.bf16.msra.mxu0 0
    %1111 = vmatprep.subr.bf16.mxu0 0
    %1112 = vmatpush1.bf16.msra.mxu0 0
    %1113 = vmatprep.subr.bf16.mxu0 0
    %1114 = vmatpush1.bf16.msra.mxu0 0
    %1115 = vmatprep.subr.bf16.mxu0 0
    %1116 = vmatpush1.bf16.msra.mxu0 0
    %1117 = vmatprep.subr.bf16.mxu0 0
    %1118 = vmatpush1.bf16.msra.mxu0 0
    %1119 = vmatprep.subr.bf16.mxu0 0
    %1120 = vmatpush1.bf16.msra.mxu0 0
    %1121 = vmatprep.subr.bf16.mxu0 0
    %1122 = vmatpush1.bf16.msra.mxu0 0
    %1123 = vmatprep.subr.bf16.mxu0 0
    %1124 = vmatpush1.bf16.msra.mxu0 %v1107
    %1125 = vmatprep.subr.bf16.mxu0 0
    %1126 = vmatpush2.bf16.msra.mxu0 0
    %1127 = vmatprep.subr.bf16.mxu0 0
    %1128 = vmatpush2.bf16.msra.mxu0 0
    %1129 = vmatprep.subr.bf16.mxu0 0
    %1130 = vmatpush2.bf16.msra.mxu0 0
    %1131 = vmatprep.subr.bf16.mxu0 0
    %1132 = vmatpush2.bf16.msra.mxu0 0
    %1133 = vmatprep.subr.bf16.mxu0 0
    %1134 = vmatpush2.bf16.msra.mxu0 0
    %1135 = vmatprep.subr.bf16.mxu0 0
    %1136 = vmatpush2.bf16.msra.mxu0 0
    %1137 = vmatprep.subr.bf16.mxu0 0
    %1138 = vmatpush2.bf16.msra.mxu0 0
    %1139 = vmatprep.subr.bf16.mxu0 0
    %1140 = vmatpush2.bf16.msra.mxu0 0
    %1141 = vmatprep.mubr.bf16.mxu0 0
    %1142 = vmatmul.mubr.bf16.gmra.mxu0 %v1104
    %v1143 = vpop.f32.mrf.mxu0
    %v1144 = vadd.f32 0.0, %v1143
    %v1145 = vpop.f32.mrf.mxu0
    %v1146 = vpop.f32.mrf.mxu0
    %v1147 = vpop.f32.mrf.mxu0
    %1148 = vdwg.mxu0
    %1149 = vrot.lane.b32.xlu0 %v147, 40
    %v1150 = vpop.permute.xlu0 %1149
    %v1152 = vsel %vm151, %v1100, 0
    %v1155 = vsel %vm280, %v1150, 0
    %1157 = vmatprep.subr.bf16.mxu0 0
    %1158 = vmatpush1.bf16.msra.mxu0 0
    %1159 = vmatprep.subr.bf16.mxu0 0
    %1160 = vmatpush1.bf16.msra.mxu0 0
    %1161 = vmatprep.subr.bf16.mxu0 0
    %1162 = vmatpush1.bf16.msra.mxu0 0
    %1163 = vmatprep.subr.bf16.mxu0 0
    %1164 = vmatpush1.bf16.msra.mxu0 0
    %1165 = vmatprep.subr.bf16.mxu0 0
    %1166 = vmatpush1.bf16.msra.mxu0 0
    %1167 = vmatprep.subr.bf16.mxu0 0
    %1168 = vmatpush1.bf16.msra.mxu0 0
    %1169 = vmatprep.subr.bf16.mxu0 0
    %1170 = vmatpush1.bf16.msra.mxu0 0
    %1171 = vmatprep.subr.bf16.mxu0 0
    %1172 = vmatpush1.bf16.msra.mxu0 %v1155
    %1173 = vmatprep.subr.bf16.mxu0 0
    %1174 = vmatpush2.bf16.msra.mxu0 0
    %1175 = vmatprep.subr.bf16.mxu0 0
    %1176 = vmatpush2.bf16.msra.mxu0 0
    %1177 = vmatprep.subr.bf16.mxu0 0
    %1178 = vmatpush2.bf16.msra.mxu0 0
    %1179 = vmatprep.subr.bf16.mxu0 0
    %1180 = vmatpush2.bf16.msra.mxu0 0
    %1181 = vmatprep.subr.bf16.mxu0 0
    %1182 = vmatpush2.bf16.msra.mxu0 0
    %1183 = vmatprep.subr.bf16.mxu0 0
    %1184 = vmatpush2.bf16.msra.mxu0 0
    %1185 = vmatprep.subr.bf16.mxu0 0
    %1186 = vmatpush2.bf16.msra.mxu0 0
    %1187 = vmatprep.subr.bf16.mxu0 0
    %1188 = vmatpush2.bf16.msra.mxu0 0
    %1189 = vmatprep.mubr.bf16.mxu0 0
    %1190 = vmatmul.mubr.bf16.gmra.mxu0 %v1152
    %v1191 = vpop.f32.mrf.mxu0
    %v1192 = vadd.f32 0.0, %v1191
    %v1193 = vpop.f32.mrf.mxu0
    %v1194 = vpop.f32.mrf.mxu0
    %v1195 = vpop.f32.mrf.mxu0
    %1196 = vdwg.mxu0
    %v1197 = vpack.c.bf16 %v1192, %v1144
    %v1198 = vld [vmem:[#allocation7 + $0xc] sm:$0xf]
    %v1200 = vsel %vm151, %v1197, 0
    %v1203 = vsel %vm280, %v1198, 0
    %1205 = vmatprep.subr.bf16.mxu0 0
    %1206 = vmatpush1.bf16.msra.mxu0 0
    %1207 = vmatprep.subr.bf16.mxu0 0
    %1208 = vmatpush1.bf16.msra.mxu0 0
    %1209 = vmatprep.subr.bf16.mxu0 0
    %1210 = vmatpush1.bf16.msra.mxu0 0
    %1211 = vmatprep.subr.bf16.mxu0 0
    %1212 = vmatpush1.bf16.msra.mxu0 0
    %1213 = vmatprep.subr.bf16.mxu0 0
    %1214 = vmatpush1.bf16.msra.mxu0 0
    %1215 = vmatprep.subr.bf16.mxu0 0
    %1216 = vmatpush1.bf16.msra.mxu0 0
    %1217 = vmatprep.subr.bf16.mxu0 0
    %1218 = vmatpush1.bf16.msra.mxu0 0
    %1219 = vmatprep.subr.bf16.mxu0 0
    %1220 = vmatpush1.bf16.msra.mxu0 %v1203
    %1221 = vmatprep.subr.bf16.mxu0 0
    %1222 = vmatpush2.bf16.msra.mxu0 0
    %1223 = vmatprep.subr.bf16.mxu0 0
    %1224 = vmatpush2.bf16.msra.mxu0 0
    %1225 = vmatprep.subr.bf16.mxu0 0
    %1226 = vmatpush2.bf16.msra.mxu0 0
    %1227 = vmatprep.subr.bf16.mxu0 0
    %1228 = vmatpush2.bf16.msra.mxu0 0
    %1229 = vmatprep.subr.bf16.mxu0 0
    %1230 = vmatpush2.bf16.msra.mxu0 0
    %1231 = vmatprep.subr.bf16.mxu0 0
    %1232 = vmatpush2.bf16.msra.mxu0 0
    %1233 = vmatprep.subr.bf16.mxu0 0
    %1234 = vmatpush2.bf16.msra.mxu0 0
    %1235 = vmatprep.subr.bf16.mxu0 0
    %1236 = vmatpush2.bf16.msra.mxu0 0
    %1237 = vmatprep.mubr.bf16.mxu0 0
    %1238 = vmatmul.mubr.bf16.gmra.mxu0 %v1200
    %v1239 = vpop.f32.mrf.mxu0
    %v1240 = vadd.f32 0.0, %v1239
    %v1241 = vpop.f32.mrf.mxu0
    %v1242 = vpop.f32.mrf.mxu0
    %v1243 = vadd.f32 0.0, %v1242
    %v1244 = vpop.f32.mrf.mxu0
    %1245 = vdwg.mxu0
    %v1246 = vadd.f32 %v971, %v1240
    %v1247 = vadd.f32 %v972, %v1243
    %1248 = vst.msk [vmem:[#allocation8] sm:$0xff] %vm89, %v1246
    %1249 = vst.msk [vmem:[#allocation8 + $0x8] sm:$0xff] %vm89, %v1247
    // Predicated region
    $region34: #{tpu_custom_call.1} parent=1 // pred_check
      _
    $region35: #{tpu_custom_call.1} parent=1 // pred_check_branch
      %1251 = sbr.rel (0) target = $region37
    $region36: #{tpu_custom_call.1} parent=1 // pred_region
      %s1253 = ssub.s32 256, 256
      %1254 = vsyncadd [#allocation4], %s1253
      %s1255 = sshll.u32 [#allocation8], 4
      %s1256 = int_to_ptr.vmem [resolvable:$true] %s1255
      %1261 = dma.vmem_to_hbm [thread:$0]  %s1256, 256, %s5, [#allocation4], 128, 128, 8
    $region37: #{tpu_custom_call.1} parent=1 // pred_fallthru
      _
    // Predicated region
    $region38: #{tpu_custom_call.1} parent=1 // pred_check
      _
    $region39: #{tpu_custom_call.1} parent=1 // pred_check_branch
      %1263 = sbr.rel (0) target = $region41
    $region40: #{tpu_custom_call.1} parent=1 // pred_region
      %1264 = dma.done [#allocation4], 256
    $region41: #{tpu_custom_call.1} parent=1 // pred_fallthru
      _
    %1265 = vsyncpa [#allocation3], 1
    %1266 = vsyncpa [#allocation6], 1
    %1267 = vsyncpa [#allocation4], 1

</llo_original>
